<compile_context>
chip_gen: v6e
topology: v6e:2x2x1
jax: 0.10.0
libtpu: 0.0.40
codegen_flags: <defaults>
</compile_context>

<pallas_src>
import functools

import jax
import jax.numpy as jnp
import numpy as np
from jax.experimental import pallas as pl
from jax.experimental.pallas import tpu as pltpu


_INV_SQRT2 = 0.7071067811865476


def _erf_approx(x):
    """Abramowitz & Stegun 7.1.26 erf approximation (|err| <= ~1.5e-7 in f32).

    Matches PyTorch's exact-erf GELU far inside the bf16-matmul tolerance.  The divide is
    routed to the EUP via pl.reciprocal(approx=True); exp also runs on the EUP.
    """
    a1, a2, a3, a4, a5 = (0.254829592, -0.284496736, 1.421413741,
                          -1.453152027, 1.061405429)
    p = 0.3275911
    s = jnp.where(x < 0, -1.0, 1.0)
    ax = jnp.abs(x)
    t = pl.reciprocal(1.0 + p * ax, approx=True)
    poly = ((((a5 * t + a4) * t + a3) * t + a2) * t + a1) * t
    return s * (1.0 - poly * jnp.exp(-ax * ax))


def _gelu(x):
    return 0.5 * x * (1.0 + _erf_approx(x * _INV_SQRT2))


def mrconv2d_kernel(xf_ref, xq_ref, i0_ref, i1_ref, wx_ref, wr_ref, b_ref, o_ref, *, k):
    """One (batch, node-tile) grid point.

    xf_ref : (1, C, Npad)  bf16  full node set (gather source), channel-major
    xq_ref : (1, C, TN)    bf16  this tile's query-node features
    i0_ref : (1, K, TN)    int32 edge_index[0] slice (neighbors j)
    i1_ref : (1, K, TN)    int32 edge_index[1] slice (centers i)
    wx_ref : (C_out, C)    bf16  dense-expanded grouped weight acting on x channels
    wr_ref : (C_out, C)    bf16  dense-expanded grouped weight acting on rel channels
    b_ref  : (C_out, 1)    f32   bias
    o_ref  : (1, C_out, TN)      output tile, channel-major, node axis lane-dense
    """
    x_all = xf_ref[0]                                   # (C, Npad)
    x_q = xq_ref[0]                                     # (C, TN)
    idx0 = i0_ref[0]                                    # (K, TN)
    idx1 = i1_ref[0]
    npad = x_all.shape[1]
    tn = x_q.shape[1]

    # Signed one-hot gather matrix for all K neighbors of this node tile, built directly
    # in bf16 (values are exactly 0 / +-1, so the gather itself loses no precision).
    col = jax.lax.broadcasted_iota(jnp.int32, (1, 1, npad), 2)
    g = ((idx0[:, :, None] == col).astype(jnp.bfloat16)
         - (idx1[:, :, None] == col).astype(jnp.bfloat16))      # (K, TN, Npad)
    g = g.reshape(k * tn, npad)                                  # ((K*TN), Npad)

    # Single MXU pass: gathered differences for every k, channel-major (node axis on lanes).
    stacked = jax.lax.dot_general(
        x_all, g, (((1,), (1,)), ((), ())),
        preferred_element_type=jnp.float32)                      # (C, K*TN) f32

    # Balanced max tree over the K lane-aligned slabs (pure VPU, no relayout).
    parts = [stacked[:, j * tn:(j + 1) * tn] for j in range(k)]  # each (C, TN)
    while len(parts) > 1:
        nxt = [jnp.maximum(parts[i], parts[i + 1])
               for i in range(0, len(parts) - 1, 2)]
        if len(parts) % 2:
            nxt.append(parts[-1])
        parts = nxt
    rel = parts[0].astype(jnp.bfloat16)                          # (C, TN)

    # Grouped 1x1 "conv" as two accumulating bf16 MXU matmuls (no feat concat needed);
    # output stays channel-major with a lane-dense node axis.
    out = jnp.dot(wx_ref[...], x_q, preferred_element_type=jnp.float32)      # (C_out, TN)
    out = out + jnp.dot(wr_ref[...], rel, preferred_element_type=jnp.float32)
    out = out + b_ref[...]                                        # (C_out, 1) broadcast
    o_ref[0] = _gelu(out).astype(o_ref.dtype)


def _expand_grouped_weight(w_group, C, C_out, groups):
    """Expand the grouped conv weight (C_out, 2C/groups), acting on the interleaved channels
    [x0, rel0, x1, rel1, ...], into dense (C_out, 2C) split as [w_x | w_rel].  Pure jnp.

    Zeros outside each group reproduce the grouping exactly.  The dense form wastes
    ~groups x weight FLOPs vs. block-diagonal, negligible at these channel counts.
    """
    group_in = (2 * C) // groups
    group_out = C_out // groups
    w_group = jnp.asarray(w_group, jnp.float32)                  # (C_out, 2C/groups)
    c = jnp.arange(C)
    in_group = (jnp.arange(C_out)[:, None] // group_out) == ((2 * c)[None, :] // group_in)
    wx = jnp.where(in_group, w_group[:, (2 * c) % group_in], 0.0)       # acts on x channels
    wr = jnp.where(in_group, w_group[:, (2 * c + 1) % group_in], 0.0)   # acts on rel channels
    return wx, wr                                                # each (C_out, C)


def mrconv2d_pallas(x, edge_index, w_group, bias, groups=4, tn=128):
    # x: (B, C, N, 1) float32 (PyTorch-style); edge_index: (2, B, N, K) int32
    B, C, N, _ = x.shape
    K = edge_index.shape[-1]
    C_out = w_group.shape[0]

    wx, wr = _expand_grouped_weight(w_group, C, C_out, groups)
    wx = wx.astype(jnp.bfloat16)
    wr = wr.astype(jnp.bfloat16)
    b2d = jnp.asarray(bias, jnp.float32).reshape(C_out, 1)

    # bf16 input in native channel-major layout; pad node axis to a lane multiple (128).
    Npad = -(-N // 128) * 128
    tn = min(tn, Npad)
    if Npad % tn:
        tn = 128          # TN must divide the padded node count; 128 always does.
    nt = Npad // tn

    x_cn = x[..., 0].astype(jnp.bfloat16)                        # (B, C, N)
    idx0 = jnp.swapaxes(edge_index[0].astype(jnp.int32), 1, 2)   # (B, K, N)
    idx1 = jnp.swapaxes(edge_index[1].astype(jnp.int32), 1, 2)
    if Npad != N:
        pad = ((0, 0), (0, 0), (0, Npad - N))
        x_cn = jnp.pad(x_cn, pad)    # zero feature columns: never referenced by any index
        idx0 = jnp.pad(idx0, pad)    # padded query nodes gather node 0; cropped after the call
        idx1 = jnp.pad(idx1, pad)

    # x is passed twice: once as the full gather source (re-fetched only when the batch index
    # changes) and once as a small per-tile query block — avoids any in-kernel dynamic lane slice.
    out_cn = pl.pallas_call(
        functools.partial(mrconv2d_kernel, k=K),
        out_shape=jax.ShapeDtypeStruct((B, C_out, Npad), jnp.float32),
        grid_spec=pltpu.PrefetchScalarGridSpec(
            num_scalar_prefetch=0,
            grid=(B, nt),
            in_specs=[
                pl.BlockSpec((1, C, Npad), lambda b, t: (b, 0, 0)),
                pl.BlockSpec((1, C, tn), lambda b, t: (b, 0, t)),
                pl.BlockSpec((1, K, tn), lambda b, t: (b, 0, t)),
                pl.BlockSpec((1, K, tn), lambda b, t: (b, 0, t)),
                pl.BlockSpec((C_out, C), lambda b, t: (0, 0)),
                pl.BlockSpec((C_out, C), lambda b, t: (0, 0)),
                pl.BlockSpec((C_out, 1), lambda b, t: (0, 0)),
            ],
            out_specs=pl.BlockSpec((1, C_out, tn), lambda b, t: (b, 0, t)),
        ),
        compiler_params=pltpu.CompilerParams(
            # Both axes independent -> both TensorCores busy on v7x even at B=1.
            dimension_semantics=("parallel", "parallel"),
            vmem_limit_bytes=48 * 1024 * 1024),
    )(x_cn, x_cn, idx0, idx1, wx, wr, b2d)

    return out_cn[:, :, :N][..., None]                           # (B, C_out, N, 1)


def mrconv2d_ref(x, edge_index, w_group, bias, groups=4):
    """Pure-JAX f32 reference mirroring the PyTorch forward (exact erf GELU)."""
    B, C, N, _ = x.shape
    xn = x[..., 0]                                        # (B, C, N)
    idx0, idx1 = edge_index[0], edge_index[1]             # (B, N, K)

    gather = lambda xb, idxb: jnp.take(xb, idxb, axis=1)  # (C, N, K)
    x_j = jax.vmap(gather)(xn, idx0)
    x_i = jax.vmap(gather)(xn, idx1)
    rel = jnp.max(x_j - x_i, axis=-1)                     # (B, C, N)

    feat = jnp.stack([xn, rel], axis=2).reshape(B, 2 * C, N)   # interleaved channels
    C_out = w_group.shape[0]
    group_in = 2 * C // groups
    group_out = C_out // groups
    outs = []
    for g in range(groups):
        fg = feat[:, g * group_in:(g + 1) * group_in, :]
        wg = w_group[g * group_out:(g + 1) * group_out, :]
        outs.append(jnp.einsum('oc,bcn->bon', wg, fg,
                               precision=jax.lax.Precision.HIGHEST))
    out = jnp.concatenate(outs, axis=1) + bias[None, :, None]
    return jax.nn.gelu(out, approximate=False)[..., None]      # exact erf GELU (PyTorch default)


if __name__ == "__main__":
    key = jax.random.PRNGKey(0)
    B, C, N, K = 2, 32, 64, 8          # batch, in_channels, num nodes (H*W), neighbors
    C_out, groups = 64, 4
    k1, k2, k3, k4 = jax.random.split(key, 4)

    x = jax.random.normal(k1, (B, C, N, 1), dtype=jnp.float32)
    edge_index = jax.random.randint(k2, (2, B, N, K), 0, N, dtype=jnp.int32)
    # Conv2d(2C, C_out, 1, groups=4, bias=True): weight (C_out, 2C/4, 1, 1) -> (C_out, 2C/4)
    w_group = 0.1 * jax.random.normal(k3, (C_out, 2 * C // groups), dtype=jnp.float32)
    bias = 0.1 * jax.random.normal(k4, (C_out,), dtype=jnp.float32)

    out = mrconv2d_pallas(x, edge_index, w_group, bias, groups)
    out = jax.block_until_ready(out)

    ref = mrconv2d_ref(x, edge_index, w_group, bias, groups)
    # bf16 MXU inputs (one-hot side exact; activations/weights round) -> ~1e-2 worst-case abs.
    np.testing.assert_allclose(np.asarray(out), np.asarray(ref), rtol=2e-2, atol=2e-2)
    print("KERNEL_OK")
</pallas_src>

<mosaic_0001>
module attributes {stable_mosaic.version = 11 : i64} {
  func.func @mrconv2d_kernel(%arg0: i32, %arg1: i32, %arg2: memref<1x32x128xbf16, #tpu.memory_space<vmem>>, %arg3: memref<1x32x128xbf16, #tpu.memory_space<vmem>>, %arg4: memref<1x8x128xi32, #tpu.memory_space<vmem>>, %arg5: memref<1x8x128xi32, #tpu.memory_space<vmem>>, %arg6: memref<64x32xbf16, #tpu.memory_space<vmem>>, %arg7: memref<64x32xbf16, #tpu.memory_space<vmem>>, %arg8: memref<64x1xf32, #tpu.memory_space<vmem>>, %arg9: memref<1x64x128xf32, #tpu.memory_space<vmem>>) attributes {dimension_semantics = [#tpu.dimension_semantics<parallel>, #tpu.dimension_semantics<parallel>], iteration_bounds = array<i64: 2, 1>, scalar_prefetch = 0 : i64, scratch_operands = 0 : i64, tpu.core_type = #tpu.core_type<tc>, window_params = [{transform_indices = @transform_0, window_bounds = array<i64: 1, 32, 128>}, {transform_indices = @transform_1, window_bounds = array<i64: 1, 32, 128>}, {transform_indices = @transform_2, window_bounds = array<i64: 1, 8, 128>}, {transform_indices = @transform_3, window_bounds = array<i64: 1, 8, 128>}, {pipeline_mode = #tpu.pipeline_mode<synchronous>, transform_indices = @transform_4, window_bounds = array<i64: 64, 32>}, {pipeline_mode = #tpu.pipeline_mode<synchronous>, transform_indices = @transform_5, window_bounds = array<i64: 64, 32>}, {pipeline_mode = #tpu.pipeline_mode<synchronous>, transform_indices = @transform_6, window_bounds = array<i64: 64, 1>}, {transform_indices = @transform_7, window_bounds = array<i64: 1, 64, 128>}]} {
    %c0 = arith.constant 0 : index
    %c0_0 = arith.constant 0 : index
    %c0_1 = arith.constant 0 : index
    %0 = vector.load %arg2[%c0, %c0_0, %c0_1] : memref<1x32x128xbf16, #tpu.memory_space<vmem>>, vector<1x32x128xbf16>
    %1 = vector.shape_cast %0 : vector<1x32x128xbf16> to vector<32x128xbf16>
    %c0_2 = arith.constant 0 : index
    %c0_3 = arith.constant 0 : index
    %c0_4 = arith.constant 0 : index
    %2 = vector.load %arg3[%c0_2, %c0_3, %c0_4] : memref<1x32x128xbf16, #tpu.memory_space<vmem>>, vector<1x32x128xbf16>
    %3 = vector.shape_cast %2 : vector<1x32x128xbf16> to vector<32x128xbf16>
    %c0_5 = arith.constant 0 : index
    %c0_6 = arith.constant 0 : index
    %c0_7 = arith.constant 0 : index
    %4 = vector.load %arg4[%c0_5, %c0_6, %c0_7] : memref<1x8x128xi32, #tpu.memory_space<vmem>>, vector<1x8x128xi32>
    %5 = vector.shape_cast %4 : vector<1x8x128xi32> to vector<8x128xi32>
    %c0_8 = arith.constant 0 : index
    %c0_9 = arith.constant 0 : index
    %c0_10 = arith.constant 0 : index
    %6 = vector.load %arg5[%c0_8, %c0_9, %c0_10] : memref<1x8x128xi32, #tpu.memory_space<vmem>>, vector<1x8x128xi32>
    %7 = vector.shape_cast %6 : vector<1x8x128xi32> to vector<8x128xi32>
    %8 = tpu.iota {dimensions = array<i32: 2>} : vector<1x1x128xi32>
    %9 = vector.shape_cast %5 : vector<8x128xi32> to vector<8x128x1xi32>
    %10 = vector.broadcast %9 : vector<8x128x1xi32> to vector<8x128x128xi32>
    %11 = vector.broadcast %8 : vector<1x1x128xi32> to vector<8x128x128xi32>
    %12 = arith.cmpi eq, %10, %11 : vector<8x128x128xi32>
    %13 = arith.extui %12 : vector<8x128x128xi1> to vector<8x128x128xi32>
    %14 = arith.sitofp %13 : vector<8x128x128xi32> to vector<8x128x128xf32>
    %15 = arith.truncf %14 : vector<8x128x128xf32> to vector<8x128x128xbf16>
    %16 = vector.shape_cast %7 : vector<8x128xi32> to vector<8x128x1xi32>
    %17 = vector.broadcast %16 : vector<8x128x1xi32> to vector<8x128x128xi32>
    %18 = vector.broadcast %8 : vector<1x1x128xi32> to vector<8x128x128xi32>
    %19 = arith.cmpi eq, %17, %18 : vector<8x128x128xi32>
    %20 = arith.extui %19 : vector<8x128x128xi1> to vector<8x128x128xi32>
    %21 = arith.sitofp %20 : vector<8x128x128xi32> to vector<8x128x128xf32>
    %22 = arith.truncf %21 : vector<8x128x128xf32> to vector<8x128x128xbf16>
    %23 = arith.subf %15, %22 : vector<8x128x128xbf16>
    %24 = vector.shape_cast %23 : vector<8x128x128xbf16> to vector<1024x128xbf16>
    %cst = arith.constant dense<0.000000e+00> : vector<32x1024xf32>
    %25 = tpu.matmul %1, %24, %cst {dimension_numbers = #tpu.dot_dimension_numbers<[1], [1], [0], [0], [0, 0, 1, 0], [], []>} : vector<32x128xbf16>, vector<1024x128xbf16>, vector<32x1024xf32> -> vector<32x1024xf32>
    %26 = vector.extract_strided_slice %25 {offsets = [0, 0], sizes = [32, 128], strides = [1, 1]} : vector<32x1024xf32> to vector<32x128xf32>
    %27 = vector.extract_strided_slice %25 {offsets = [0, 128], sizes = [32, 128], strides = [1, 1]} : vector<32x1024xf32> to vector<32x128xf32>
    %28 = vector.extract_strided_slice %25 {offsets = [0, 256], sizes = [32, 128], strides = [1, 1]} : vector<32x1024xf32> to vector<32x128xf32>
    %29 = vector.extract_strided_slice %25 {offsets = [0, 384], sizes = [32, 128], strides = [1, 1]} : vector<32x1024xf32> to vector<32x128xf32>
    %30 = vector.extract_strided_slice %25 {offsets = [0, 512], sizes = [32, 128], strides = [1, 1]} : vector<32x1024xf32> to vector<32x128xf32>
    %31 = vector.extract_strided_slice %25 {offsets = [0, 640], sizes = [32, 128], strides = [1, 1]} : vector<32x1024xf32> to vector<32x128xf32>
    %32 = vector.extract_strided_slice %25 {offsets = [0, 768], sizes = [32, 128], strides = [1, 1]} : vector<32x1024xf32> to vector<32x128xf32>
    %33 = vector.extract_strided_slice %25 {offsets = [0, 896], sizes = [32, 128], strides = [1, 1]} : vector<32x1024xf32> to vector<32x128xf32>
    %34 = arith.maximumf %26, %27 : vector<32x128xf32>
    %35 = arith.maximumf %28, %29 : vector<32x128xf32>
    %36 = arith.maximumf %30, %31 : vector<32x128xf32>
    %37 = arith.maximumf %32, %33 : vector<32x128xf32>
    %38 = arith.maximumf %34, %35 : vector<32x128xf32>
    %39 = arith.maximumf %36, %37 : vector<32x128xf32>
    %40 = arith.maximumf %38, %39 : vector<32x128xf32>
    %41 = arith.truncf %40 : vector<32x128xf32> to vector<32x128xbf16>
    %c0_11 = arith.constant 0 : index
    %c0_12 = arith.constant 0 : index
    %42 = vector.load %arg6[%c0_11, %c0_12] : memref<64x32xbf16, #tpu.memory_space<vmem>>, vector<64x32xbf16>
    %cst_13 = arith.constant dense<0.000000e+00> : vector<64x128xf32>
    %43 = tpu.matmul %42, %3, %cst_13 {dimension_numbers = #tpu.dot_dimension_numbers<[1], [0], [0], [1], [0, 0, 1, 1], [], []>} : vector<64x32xbf16>, vector<32x128xbf16>, vector<64x128xf32> -> vector<64x128xf32>
    %c0_14 = arith.constant 0 : index
    %c0_15 = arith.constant 0 : index
    %44 = vector.load %arg7[%c0_14, %c0_15] : memref<64x32xbf16, #tpu.memory_space<vmem>>, vector<64x32xbf16>
    %cst_16 = arith.constant dense<0.000000e+00> : vector<64x128xf32>
    %45 = tpu.matmul %44, %41, %cst_16 {dimension_numbers = #tpu.dot_dimension_numbers<[1], [0], [0], [1], [0, 0, 1, 1], [], []>} : vector<64x32xbf16>, vector<32x128xbf16>, vector<64x128xf32> -> vector<64x128xf32>
    %46 = arith.addf %43, %45 : vector<64x128xf32>
    %c0_17 = arith.constant 0 : index
    %c0_18 = arith.constant 0 : index
    %47 = vector.load %arg8[%c0_17, %c0_18] : memref<64x1xf32, #tpu.memory_space<vmem>>, vector<64x1xf32>
    %48 = vector.broadcast %47 : vector<64x1xf32> to vector<64x128xf32>
    %49 = arith.addf %46, %48 : vector<64x128xf32>
    %cst_19 = arith.constant 5.000000e-01 : f32
    %50 = vector.broadcast %cst_19 : f32 to vector<64x128xf32>
    %51 = arith.mulf %50, %49 : vector<64x128xf32>
    %cst_20 = arith.constant 0.707106769 : f32
    %52 = vector.broadcast %cst_20 : f32 to vector<64x128xf32>
    %53 = arith.mulf %49, %52 : vector<64x128xf32>
    %cst_21 = arith.constant 0.000000e+00 : f32
    %54 = vector.broadcast %cst_21 : f32 to vector<64x128xf32>
    %55 = arith.cmpf olt, %53, %54 : vector<64x128xf32>
    %cst_22 = arith.constant -1.000000e+00 : f32
    %cst_23 = arith.constant 1.000000e+00 : f32
    %56 = vector.broadcast %cst_22 : f32 to vector<64x128xf32>
    %57 = vector.broadcast %cst_23 : f32 to vector<64x128xf32>
    %58 = arith.select %55, %56, %57 : vector<64x128xi1>, vector<64x128xf32>
    %59 = math.absf %53 : vector<64x128xf32>
    %cst_24 = arith.constant 0.327591091 : f32
    %60 = vector.broadcast %cst_24 : f32 to vector<64x128xf32>
    %61 = arith.mulf %60, %59 : vector<64x128xf32>
    %cst_25 = arith.constant 1.000000e+00 : f32
    %62 = vector.broadcast %cst_25 : f32 to vector<64x128xf32>
    %63 = arith.addf %62, %61 : vector<64x128xf32>
    %64 = tpu.reciprocal %63 {approx = true} : vector<64x128xf32> -> vector<64x128xf32>
    %cst_26 = arith.constant 1.06140542 : f32
    %65 = vector.broadcast %cst_26 : f32 to vector<64x128xf32>
    %66 = arith.mulf %65, %64 : vector<64x128xf32>
    %cst_27 = arith.constant -1.45315206 : f32
    %67 = vector.broadcast %cst_27 : f32 to vector<64x128xf32>
    %68 = arith.addf %66, %67 : vector<64x128xf32>
    %69 = arith.mulf %68, %64 : vector<64x128xf32>
    %cst_28 = arith.constant 1.42141378 : f32
    %70 = vector.broadcast %cst_28 : f32 to vector<64x128xf32>
    %71 = arith.addf %69, %70 : vector<64x128xf32>
    %72 = arith.mulf %71, %64 : vector<64x128xf32>
    %cst_29 = arith.constant -0.284496725 : f32
    %73 = vector.broadcast %cst_29 : f32 to vector<64x128xf32>
    %74 = arith.addf %72, %73 : vector<64x128xf32>
    %75 = arith.mulf %74, %64 : vector<64x128xf32>
    %cst_30 = arith.constant 0.254829586 : f32
    %76 = vector.broadcast %cst_30 : f32 to vector<64x128xf32>
    %77 = arith.addf %75, %76 : vector<64x128xf32>
    %78 = arith.mulf %77, %64 : vector<64x128xf32>
    %cst_31 = arith.constant 0.000000e+00 : f32
    %79 = vector.broadcast %cst_31 : f32 to vector<64x128xf32>
    %80 = arith.subf %79, %59 : vector<64x128xf32>
    %81 = arith.mulf %80, %59 : vector<64x128xf32>
    %82 = math.exp %81 : vector<64x128xf32>
    %83 = arith.mulf %78, %82 : vector<64x128xf32>
    %cst_32 = arith.constant 1.000000e+00 : f32
    %84 = vector.broadcast %cst_32 : f32 to vector<64x128xf32>
    %85 = arith.subf %84, %83 : vector<64x128xf32>
    %86 = arith.mulf %58, %85 : vector<64x128xf32>
    %cst_33 = arith.constant 1.000000e+00 : f32
    %87 = vector.broadcast %cst_33 : f32 to vector<64x128xf32>
    %88 = arith.addf %87, %86 : vector<64x128xf32>
    %89 = arith.mulf %51, %88 : vector<64x128xf32>
    %c0_34 = arith.constant 0 : index
    %c0_35 = arith.constant 0 : index
    %c0_36 = arith.constant 0 : index
    %90 = vector.load %arg9[%c0_34, %c0_35, %c0_36] : memref<1x64x128xf32, #tpu.memory_space<vmem>>, vector<1x64x128xf32>
    %91 = vector.shape_cast %90 : vector<1x64x128xf32> to vector<64x128xf32>
    %92 = vector.shape_cast %89 : vector<64x128xf32> to vector<1x64x128xf32>
    tpu.vector_store %arg9[%c0_34, %c0_35, %c0_36], %92 {strides = array<i32>} : memref<1x64x128xf32, #tpu.memory_space<vmem>>, vector<1x64x128xf32>,
    return
  }
  func.func @transform_0(%arg0: i32, %arg1: i32) -> (i32, i32, i32) {
    %c0_i32 = arith.constant 0 : i32
    %c0_i32_0 = arith.constant 0 : i32
    %c0_i32_1 = arith.constant 0 : i32
    return %arg0, %c0_i32, %c0_i32_0 : i32, i32, i32
  }
  func.func @transform_1(%arg0: i32, %arg1: i32) -> (i32, i32, i32) {
    %c0_i32 = arith.constant 0 : i32
    %c0_i32_0 = arith.constant 0 : i32
    return %arg0, %c0_i32, %arg1 : i32, i32, i32
  }
  func.func @transform_2(%arg0: i32, %arg1: i32) -> (i32, i32, i32) {
    %c0_i32 = arith.constant 0 : i32
    %c0_i32_0 = arith.constant 0 : i32
    return %arg0, %c0_i32, %arg1 : i32, i32, i32
  }
  func.func @transform_3(%arg0: i32, %arg1: i32) -> (i32, i32, i32) {
    %c0_i32 = arith.constant 0 : i32
    %c0_i32_0 = arith.constant 0 : i32
    return %arg0, %c0_i32, %arg1 : i32, i32, i32
  }
  func.func @transform_4(%arg0: i32, %arg1: i32) -> (i32, i32) {
    %c0_i32 = arith.constant 0 : i32
    %c0_i32_0 = arith.constant 0 : i32
    %c0_i32_1 = arith.constant 0 : i32
    return %c0_i32, %c0_i32_0 : i32, i32
  }
  func.func @transform_5(%arg0: i32, %arg1: i32) -> (i32, i32) {
    %c0_i32 = arith.constant 0 : i32
    %c0_i32_0 = arith.constant 0 : i32
    %c0_i32_1 = arith.constant 0 : i32
    return %c0_i32, %c0_i32_0 : i32, i32
  }
  func.func @transform_6(%arg0: i32, %arg1: i32) -> (i32, i32) {
    %c0_i32 = arith.constant 0 : i32
    %c0_i32_0 = arith.constant 0 : i32
    %c0_i32_1 = arith.constant 0 : i32
    return %c0_i32, %c0_i32_0 : i32, i32
  }
  func.func @transform_7(%arg0: i32, %arg1: i32) -> (i32, i32, i32) {
    %c0_i32 = arith.constant 0 : i32
    %c0_i32_0 = arith.constant 0 : i32
    return %arg0, %c0_i32, %arg1 : i32, i32, i32
  }
}

</mosaic_0001>

<llo_original>
// kernel: tpu_custom_call.1
$region0: #{tpu_custom_call.1}
  #allocation0 [shape = 'u32[]', space=smem, size = 0x4, offset = 0x4, fixed_abs, tag = 'smem constant byte address 0x4 - core index']
  #allocation1 [shape = 'u32[144,128]{1,0:T(1,128)}', space=vmem, size = 0x12000, scoped, tag = 'internal scratch']
  %s0 = inlined_call_operand.vmem [shape: bf16[2,32,128], index: 0, kind: input, shape index: {}]
  %s1 = inlined_call_operand.vmem [shape: bf16[2,32,128], index: 1, kind: input, shape index: {}]
  %s2 = inlined_call_operand.vmem [shape: s32[2,8,128], index: 2, kind: input, shape index: {}]
  %s3 = inlined_call_operand.vmem [shape: s32[2,8,128], index: 3, kind: input, shape index: {}]
  %s4 = inlined_call_operand.vmem [shape: bf16[64,32], index: 4, kind: input, shape index: {}]
  %s5 = inlined_call_operand.vmem [shape: bf16[64,32], index: 5, kind: input, shape index: {}]
  %s6 = inlined_call_operand.vmem [shape: f32[64,1], index: 6, kind: input, shape index: {}]
  %s7 = inlined_call_operand.hbm [shape: f32[2,64,128], index: 7, kind: output, shape index: {}]
  %s8 = sld [smem:[#allocation0]]
  $region61: #{tpu_custom_call.1} parent=0
    _
  %s10 = ssub.s32 1, %s8
  %s11 = scalar_select 0, %s10, %s8
  $region1: #{tpu_custom_call.1} parent=0
    #allocation2 [shape = 'u8[65536]{0}', space=vmem, size = 0x10000, scoped, tag = 'output window, operand 0']
    #allocation3 [shape = 's32[2]{0}', space=sflag, size = 0x8, scoped, tag = 'scoped memory for tpu_custom_call.1']
    %12 = vsyncpa [#allocation3], 0
    %s13 = scalar_lea.sflag [#allocation3], 1
    %14 = vsyncpa %s13, 0
    loop: start=0, step=1, limit=4
    $region2: #{tpu_custom_call.1} parent=1 // loop_pre_header
      _
    $region3: #{tpu_custom_call.1} parent=1 // loop_header
      %s16 = sphi 0, %s20
      %p17 = scmp.ge.s32.totalorder %s16, 4
      %s23 = sphi 0, %s35
      %s24 = sphi 0, %s31
      %s25 = sphi 0, %s23
      %s26 = sphi 0, %s24
      %s27 = sphi 0, %s25
      %s28 = sphi 0, %s26
      %s38 = sphi 0, %s40
      %s41 = sphi 0, %s38
      %s42 = sphi 0, %s41
      %s58 = sphi 0, %s42
      %s66 = sphi 0, %s68
      %s69 = sphi 0, %s66
      %s70 = sphi 0, %s69
      %s86 = sphi 0, %s70
      %s94 = sphi 0, %s96
      %s97 = sphi 0, %s94
      %s98 = sphi 0, %s97
      %s114 = sphi 0, %s98
      %s122 = sphi 0, %s124
      %s125 = sphi 0, %s122
      %s126 = sphi 0, %s125
      %s142 = sphi 0, %s126
      %s146 = sphi 0, %s146
      %s148 = sphi 0, %s146
      %s149 = sphi 0, %s148
      %s163 = sphi 0, %s149
      %s167 = sphi 0, %s167
      %s169 = sphi 0, %s167
      %s170 = sphi 0, %s169
      %s184 = sphi 0, %s170
      %s188 = sphi 0, %s188
      %s190 = sphi 0, %s188
      %s191 = sphi 0, %s190
      %s205 = sphi 0, %s191
      %s213 = sphi 0, %s215
      %s216 = sphi 0, %s213
      %s217 = sphi 0, %s216
      %s233 = sphi 0, %s217
    $region4: #{tpu_custom_call.1} parent=1 // loop_header_branch
      %19 = sbr.rel (%p17) target = $region8
    $region5: #{tpu_custom_call.1} parent=1 // loop_body
      %s21 = ssub.s32 %s16, 1
      %s22 = ssub.s32 %s16, 2
      %s29 = sadd.s32 1, %s24
      %p30 = scmp.ge.s32.totalorder %s29, 1
      %s31 = scalar_select %p30, 0, %s29
      %s32 = sadd.s32 1, %s23
      %s33 = scalar_select %p30, %s32, %s23
      %p34 = scmp.ge.s32.totalorder %s33, 2
      %s35 = scalar_select %p34, 0, %s33
      %s36 = ssub.s32 %s23, %s35
      %p37 = scmp.eq.s32.totalorder %s36, 0
      %s39 = sadd.s32 %s38, 1
      %s40 = scalar_select %p37, %s38, %s39
      %p43 = pneg %p37
      %p44 = scmp.eq.s32.totalorder %s16, 1
      %p45 = por %p43, %p44
      %p46 = scmp.ne.s32.totalorder %s38, %s41
      %p47 = scmp.eq.s32.totalorder %s16, 0
      %p48 = por %p46, %p47
      %p49 = scmp.ne.s32.totalorder %s38, %s41
      %p50 = scmp.eq.s32.totalorder %s21, 1
      %p51 = por %p49, %p50
      %p52 = scmp.ne.s32.totalorder %s41, %s42
      %p53 = scmp.eq.s32.totalorder %s21, 0
      %p54 = por %p52, %p53
      %p55 = scmp.ne.s32.totalorder %s41, %s42
      %p56 = scmp.eq.s32.totalorder %s22, 1
      %p57 = por %p55, %p56
      %p59 = scmp.ne.s32.totalorder %s42, %s58
      %p60 = scmp.eq.s32.totalorder %s22, 0
      %p61 = por %p59, %p60
      %s62 = ssub.s32 %s23, %s35
      %s63 = ssub.s32 %s24, %s31
      %s64 = sor.u32 %s62, %s63
      %p65 = scmp.eq.s32.totalorder %s64, 0
      %s67 = sadd.s32 %s66, 1
      %s68 = scalar_select %p65, %s66, %s67
      %p71 = pneg %p65
      %p72 = scmp.eq.s32.totalorder %s16, 1
      %p73 = por %p71, %p72
      %p74 = scmp.ne.s32.totalorder %s66, %s69
      %p75 = scmp.eq.s32.totalorder %s16, 0
      %p76 = por %p74, %p75
      %p77 = scmp.ne.s32.totalorder %s66, %s69
      %p78 = scmp.eq.s32.totalorder %s21, 1
      %p79 = por %p77, %p78
      %p80 = scmp.ne.s32.totalorder %s69, %s70
      %p81 = scmp.eq.s32.totalorder %s21, 0
      %p82 = por %p80, %p81
      %p83 = scmp.ne.s32.totalorder %s69, %s70
      %p84 = scmp.eq.s32.totalorder %s22, 1
      %p85 = por %p83, %p84
      %p87 = scmp.ne.s32.totalorder %s70, %s86
      %p88 = scmp.eq.s32.totalorder %s22, 0
      %p89 = por %p87, %p88
      %s90 = ssub.s32 %s23, %s35
      %s91 = ssub.s32 %s24, %s31
      %s92 = sor.u32 %s90, %s91
      %p93 = scmp.eq.s32.totalorder %s92, 0
      %s95 = sadd.s32 %s94, 1
      %s96 = scalar_select %p93, %s94, %s95
      %p99 = pneg %p93
      %p100 = scmp.eq.s32.totalorder %s16, 1
      %p101 = por %p99, %p100
      %p102 = scmp.ne.s32.totalorder %s94, %s97
      %p103 = scmp.eq.s32.totalorder %s16, 0
      %p104 = por %p102, %p103
      %p105 = scmp.ne.s32.totalorder %s94, %s97
      %p106 = scmp.eq.s32.totalorder %s21, 1
      %p107 = por %p105, %p106
      %p108 = scmp.ne.s32.totalorder %s97, %s98
      %p109 = scmp.eq.s32.totalorder %s21, 0
      %p110 = por %p108, %p109
      %p111 = scmp.ne.s32.totalorder %s97, %s98
      %p112 = scmp.eq.s32.totalorder %s22, 1
      %p113 = por %p111, %p112
      %p115 = scmp.ne.s32.totalorder %s98, %s114
      %p116 = scmp.eq.s32.totalorder %s22, 0
      %p117 = por %p115, %p116
      %s118 = ssub.s32 %s23, %s35
      %s119 = ssub.s32 %s24, %s31
      %s120 = sor.u32 %s118, %s119
      %p121 = scmp.eq.s32.totalorder %s120, 0
      %s123 = sadd.s32 %s122, 1
      %s124 = scalar_select %p121, %s122, %s123
      %p127 = pneg %p121
      %p128 = scmp.eq.s32.totalorder %s16, 1
      %p129 = por %p127, %p128
      %p130 = scmp.ne.s32.totalorder %s122, %s125
      %p131 = scmp.eq.s32.totalorder %s16, 0
      %p132 = por %p130, %p131
      %p133 = scmp.ne.s32.totalorder %s122, %s125
      %p134 = scmp.eq.s32.totalorder %s21, 1
      %p135 = por %p133, %p134
      %p136 = scmp.ne.s32.totalorder %s125, %s126
      %p137 = scmp.eq.s32.totalorder %s21, 0
      %p138 = por %p136, %p137
      %p139 = scmp.ne.s32.totalorder %s125, %s126
      %p140 = scmp.eq.s32.totalorder %s22, 1
      %p141 = por %p139, %p140
      %p143 = scmp.ne.s32.totalorder %s126, %s142
      %p144 = scmp.eq.s32.totalorder %s22, 0
      %p145 = por %p143, %p144
      %s147 = sadd.s32 %s146, 1
      %p150 = scmp.eq.s32.totalorder %s16, 1
      %p151 = scmp.ne.s32.totalorder %s146, %s148
      %p152 = scmp.eq.s32.totalorder %s16, 0
      %p153 = por %p151, %p152
      %p154 = scmp.ne.s32.totalorder %s146, %s148
      %p155 = scmp.eq.s32.totalorder %s21, 1
      %p156 = por %p154, %p155
      %p157 = scmp.ne.s32.totalorder %s148, %s149
      %p158 = scmp.eq.s32.totalorder %s21, 0
      %p159 = por %p157, %p158
      %p160 = scmp.ne.s32.totalorder %s148, %s149
      %p161 = scmp.eq.s32.totalorder %s22, 1
      %p162 = por %p160, %p161
      %p164 = scmp.ne.s32.totalorder %s149, %s163
      %p165 = scmp.eq.s32.totalorder %s22, 0
      %p166 = por %p164, %p165
      %s168 = sadd.s32 %s167, 1
      %p171 = scmp.eq.s32.totalorder %s16, 1
      %p172 = scmp.ne.s32.totalorder %s167, %s169
      %p173 = scmp.eq.s32.totalorder %s16, 0
      %p174 = por %p172, %p173
      %p175 = scmp.ne.s32.totalorder %s167, %s169
      %p176 = scmp.eq.s32.totalorder %s21, 1
      %p177 = por %p175, %p176
      %p178 = scmp.ne.s32.totalorder %s169, %s170
      %p179 = scmp.eq.s32.totalorder %s21, 0
      %p180 = por %p178, %p179
      %p181 = scmp.ne.s32.totalorder %s169, %s170
      %p182 = scmp.eq.s32.totalorder %s22, 1
      %p183 = por %p181, %p182
      %p185 = scmp.ne.s32.totalorder %s170, %s184
      %p186 = scmp.eq.s32.totalorder %s22, 0
      %p187 = por %p185, %p186
      %s189 = sadd.s32 %s188, 1
      %p192 = scmp.eq.s32.totalorder %s16, 1
      %p193 = scmp.ne.s32.totalorder %s188, %s190
      %p194 = scmp.eq.s32.totalorder %s16, 0
      %p195 = por %p193, %p194
      %p196 = scmp.ne.s32.totalorder %s188, %s190
      %p197 = scmp.eq.s32.totalorder %s21, 1
      %p198 = por %p196, %p197
      %p199 = scmp.ne.s32.totalorder %s190, %s191
      %p200 = scmp.eq.s32.totalorder %s21, 0
      %p201 = por %p199, %p200
      %p202 = scmp.ne.s32.totalorder %s190, %s191
      %p203 = scmp.eq.s32.totalorder %s22, 1
      %p204 = por %p202, %p203
      %p206 = scmp.ne.s32.totalorder %s191, %s205
      %p207 = scmp.eq.s32.totalorder %s22, 0
      %p208 = por %p206, %p207
      %s209 = ssub.s32 %s23, %s35
      %s210 = ssub.s32 %s24, %s31
      %s211 = sor.u32 %s209, %s210
      %p212 = scmp.eq.s32.totalorder %s211, 0
      %s214 = sadd.s32 %s213, 1
      %s215 = scalar_select %p212, %s213, %s214
      %p218 = pneg %p212
      %p219 = scmp.eq.s32.totalorder %s16, 1
      %p220 = por %p218, %p219
      %p221 = scmp.ne.s32.totalorder %s213, %s216
      %p222 = scmp.eq.s32.totalorder %s16, 0
      %p223 = por %p221, %p222
      %p224 = scmp.ne.s32.totalorder %s213, %s216
      %p225 = scmp.eq.s32.totalorder %s21, 1
      %p226 = por %p224, %p225
      %p227 = scmp.ne.s32.totalorder %s216, %s217
      %p228 = scmp.eq.s32.totalorder %s21, 0
      %p229 = por %p227, %p228
      %p230 = scmp.ne.s32.totalorder %s216, %s217
      %p231 = scmp.eq.s32.totalorder %s22, 1
      %p232 = por %p230, %p231
      %p234 = scmp.ne.s32.totalorder %s217, %s233
      %p235 = scmp.eq.s32.totalorder %s22, 0
      %p236 = por %p234, %p235
      %p237 = scmp.le.s32.totalorder 1, %s16
      %p238 = scmp.lt.s32.totalorder %s16, 3
      %p239 = pnand %p237, %p238
      %p240 = pneg %p239
      // Predicated region
      $region9: #{tpu_custom_call.1} parent=5 // pred_check
        _
      $region10: #{tpu_custom_call.1} parent=5 // pred_check_branch
        %242 = sbr.rel (%p239) target = $region12
      $region11: #{tpu_custom_call.1} parent=5 // pred_region
        %s243 = ssub.s32 %s16, 1
        // Predicated region
        $region13: #{tpu_custom_call.1} parent=11 // pred_check
          %p244 = pneg %p159
        $region14: #{tpu_custom_call.1} parent=11 // pred_check_branch
          %246 = sbr.rel (%p244) target = $region16
        $region15: #{tpu_custom_call.1} parent=11 // pred_region
          _
        $region16: #{tpu_custom_call.1} parent=11 // pred_fallthru
          _
        // Predicated region
        $region17: #{tpu_custom_call.1} parent=11 // pred_check
          %p247 = pneg %p180
        $region18: #{tpu_custom_call.1} parent=11 // pred_check_branch
          %249 = sbr.rel (%p247) target = $region20
        $region19: #{tpu_custom_call.1} parent=11 // pred_region
          _
        $region20: #{tpu_custom_call.1} parent=11 // pred_fallthru
          _
        // Predicated region
        $region21: #{tpu_custom_call.1} parent=11 // pred_check
          %p250 = pneg %p201
        $region22: #{tpu_custom_call.1} parent=11 // pred_check_branch
          %252 = sbr.rel (%p250) target = $region24
        $region23: #{tpu_custom_call.1} parent=11 // pred_region
          _
        $region24: #{tpu_custom_call.1} parent=11 // pred_fallthru
          _
      $region12: #{tpu_custom_call.1} parent=5 // pred_fallthru
        _
      %p253 = scmp.lt.s32.totalorder %s16, 2
      // Predicated region
      $region25: #{tpu_custom_call.1} parent=5 // pred_check
        %p254 = pneg %p253
      $region26: #{tpu_custom_call.1} parent=5 // pred_check_branch
        %256 = sbr.rel (%p254) target = $region28
      $region27: #{tpu_custom_call.1} parent=5 // pred_region
        // Predicated region
        $region29: #{tpu_custom_call.1} parent=27 // pred_check
          %p257 = pneg %p48
        $region30: #{tpu_custom_call.1} parent=27 // pred_check_branch
          %259 = sbr.rel (%p257) target = $region32
        $region31: #{tpu_custom_call.1} parent=27 // pred_region
          %p260 = scmp.lt.s32.totalorder %s23, 1
          %s261 = scalar_select %p260, %s23, 1
          %s262 = smul.addr %s261, 4
          %s263 = smul.addr %s262, 4
          %s264 = scalar_lea.vmem %s0, %s263
        $region32: #{tpu_custom_call.1} parent=27 // pred_fallthru
          _
        // Predicated region
        $region33: #{tpu_custom_call.1} parent=27 // pred_check
          %p265 = pneg %p76
        $region34: #{tpu_custom_call.1} parent=27 // pred_check_branch
          %267 = sbr.rel (%p265) target = $region36
        $region35: #{tpu_custom_call.1} parent=27 // pred_region
          %p268 = scmp.lt.s32.totalorder %s23, 1
          %s269 = scalar_select %p268, %s23, 1
          %p270 = scmp.lt.s32.totalorder %s24, 0
          %s271 = scalar_select %p270, %s24, 0
          %s272 = smul.addr %s269, 4
          %s273 = sadd.s32 %s271, %s272
          %s274 = smul.addr %s273, 4
          %s275 = scalar_lea.vmem %s1, %s274
        $region36: #{tpu_custom_call.1} parent=27 // pred_fallthru
          _
        // Predicated region
        $region37: #{tpu_custom_call.1} parent=27 // pred_check
          %p276 = pneg %p104
        $region38: #{tpu_custom_call.1} parent=27 // pred_check_branch
          %278 = sbr.rel (%p276) target = $region40
        $region39: #{tpu_custom_call.1} parent=27 // pred_region
          %p279 = scmp.lt.s32.totalorder %s23, 1
          %s280 = scalar_select %p279, %s23, 1
          %p281 = scmp.lt.s32.totalorder %s24, 0
          %s282 = scalar_select %p281, %s24, 0
          %s283 = sadd.s32 %s282, %s280
          %s284 = smul.addr %s283, 8
          %s285 = scalar_lea.vmem %s2, %s284
        $region40: #{tpu_custom_call.1} parent=27 // pred_fallthru
          _
        // Predicated region
        $region41: #{tpu_custom_call.1} parent=27 // pred_check
          %p286 = pneg %p132
        $region42: #{tpu_custom_call.1} parent=27 // pred_check_branch
          %288 = sbr.rel (%p286) target = $region44
        $region43: #{tpu_custom_call.1} parent=27 // pred_region
          %p289 = scmp.lt.s32.totalorder %s23, 1
          %s290 = scalar_select %p289, %s23, 1
          %p291 = scmp.lt.s32.totalorder %s24, 0
          %s292 = scalar_select %p291, %s24, 0
          %s293 = sadd.s32 %s292, %s290
          %s294 = smul.addr %s293, 8
          %s295 = scalar_lea.vmem %s3, %s294
        $region44: #{tpu_custom_call.1} parent=27 // pred_fallthru
          _
      $region28: #{tpu_custom_call.1} parent=5 // pred_fallthru
        _
      %p296 = scmp.le.s32.totalorder 1, %s16
      %p297 = scmp.lt.s32.totalorder %s16, 3
      %p298 = pnand %p296, %p297
      %p299 = pneg %p298
      // Predicated region
      $region45: #{tpu_custom_call.1} parent=5 // pred_check
        _
      $region46: #{tpu_custom_call.1} parent=5 // pred_check_branch
        %301 = sbr.rel (%p298) target = $region48
      $region47: #{tpu_custom_call.1} parent=5 // pred_region
        %s302 = ssub.s32 %s16, 1
        %p303 = scmp.lt.s32.totalorder %s25, 1
        %s304 = scalar_select %p303, %s25, 1
        %s305 = smul.addr %s304, 4
        %s306 = smul.addr %s305, 4
        %s307 = scalar_lea.vmem %s0, %s306
        %p308 = pneg %p54
        %p309 = pneg %p51
        %p310 = scmp.lt.s32.totalorder %s25, 1
        %s311 = scalar_select %p310, %s25, 1
        %p312 = scmp.lt.s32.totalorder %s26, 0
        %s313 = scalar_select %p312, %s26, 0
        %s314 = smul.addr %s311, 4
        %s315 = sadd.s32 %s313, %s314
        %s316 = smul.addr %s315, 4
        %s317 = scalar_lea.vmem %s1, %s316
        %p318 = pneg %p82
        %p319 = pneg %p79
        %p320 = scmp.lt.s32.totalorder %s25, 1
        %s321 = scalar_select %p320, %s25, 1
        %p322 = scmp.lt.s32.totalorder %s26, 0
        %s323 = scalar_select %p322, %s26, 0
        %s324 = sadd.s32 %s323, %s321
        %s325 = smul.addr %s324, 8
        %s326 = scalar_lea.vmem %s2, %s325
        %p327 = pneg %p110
        %p328 = pneg %p107
        %p329 = scmp.lt.s32.totalorder %s25, 1
        %s330 = scalar_select %p329, %s25, 1
        %p331 = scmp.lt.s32.totalorder %s26, 0
        %s332 = scalar_select %p331, %s26, 0
        %s333 = sadd.s32 %s332, %s330
        %s334 = smul.addr %s333, 8
        %s335 = scalar_lea.vmem %s3, %s334
        %p336 = pneg %p138
        %p337 = pneg %p135
        %p338 = pneg %p159
        %p339 = pneg %p156
        %p340 = pneg %p180
        %p341 = pneg %p177
        %p342 = pneg %p201
        %p343 = pneg %p198
        %p344 = pneg %p229
        %p345 = pneg %p226
        %s346 = sand.u32 %s216, 1
        %s347 = scalar_lea.sflag [#allocation3], %s346
        %s348 = sand.u32 %s216, 1
        %s349 = smul.addr %s348, 64
        %s350 = scalar_lea.vmem [#allocation2], %s349
        %p351 = scmp.lt.s32.totalorder %s25, 1
        %s352 = scalar_select %p351, %s25, 1
        %s353 = smul.addr %s352, 4
        %s354 = smul.addr %s353, 4
        %s355 = scalar_lea.vmem %s0, %s354
        %p356 = scmp.lt.s32.totalorder %s25, 1
        %s357 = scalar_select %p356, %s25, 1
        %p358 = scmp.lt.s32.totalorder %s26, 0
        %s359 = scalar_select %p358, %s26, 0
        %s360 = smul.addr %s357, 4
        %s361 = sadd.s32 %s359, %s360
        %s362 = smul.addr %s361, 4
        %s363 = scalar_lea.vmem %s1, %s362
        %p364 = scmp.lt.s32.totalorder %s25, 1
        %s365 = scalar_select %p364, %s25, 1
        %p366 = scmp.lt.s32.totalorder %s26, 0
        %s367 = scalar_select %p366, %s26, 0
        %s368 = sadd.s32 %s367, %s365
        %s369 = smul.addr %s368, 8
        %s370 = scalar_lea.vmem %s2, %s369
        %p371 = scmp.lt.s32.totalorder %s25, 1
        %s372 = scalar_select %p371, %s25, 1
        %p373 = scmp.lt.s32.totalorder %s26, 0
        %s374 = scalar_select %p373, %s26, 0
        %s375 = sadd.s32 %s374, %s372
        %s376 = smul.addr %s375, 8
        %s377 = scalar_lea.vmem %s3, %s376
        %v379 = vld [vmem:[%s355] sm:$0xf]
        %v380 = vld [vmem:[%s355 + $0x4] sm:$0xf]
        %v381 = vld [vmem:[%s355 + $0x8] sm:$0xf]
        %v382 = vld [vmem:[%s355 + $0xc] sm:$0xf]
        %v383 = vld [vmem:[%s363] sm:$0xf]
        %v384 = vld [vmem:[%s363 + $0x4] sm:$0xf]
        %v385 = vld [vmem:[%s363 + $0x8] sm:$0xf]
        %v386 = vld [vmem:[%s363 + $0xc] sm:$0xf]
        %v387 = vld [vmem:[%s370] sm:$0xff]
        %v388 = vld [vmem:[%s377] sm:$0xff]
        %v389 = vlaneseq
        %v390 = vand.u32 %v389, 127
        %v391 = vlaneseq
        %v392 = vshrl.u32 %v391, 7
        %v393 = vsub.s32 0, %v392
        %v394 = vrot.slane %v387, %v393
        %396 = vbcast.lane.b32.xlu0 %v394, 256
        %v397 = vpop.permute.xlu0 %396
        %s399 = sor.u32 256, 8
        %400 = vbcast.lane.b32.xlu0 %v394, %s399
        %v401 = vpop.permute.xlu0 %400
        %s403 = sor.u32 256, 16
        %404 = vbcast.lane.b32.xlu0 %v394, %s403
        %v405 = vpop.permute.xlu0 %404
        %s407 = sor.u32 256, 24
        %408 = vbcast.lane.b32.xlu0 %v394, %s407
        %v409 = vpop.permute.xlu0 %408
        %s411 = sor.u32 256, 32
        %412 = vbcast.lane.b32.xlu0 %v394, %s411
        %v413 = vpop.permute.xlu0 %412
        %s415 = sor.u32 256, 40
        %416 = vbcast.lane.b32.xlu0 %v394, %s415
        %v417 = vpop.permute.xlu0 %416
        %s419 = sor.u32 256, 48
        %420 = vbcast.lane.b32.xlu0 %v394, %s419
        %v421 = vpop.permute.xlu0 %420
        %s423 = sor.u32 256, 56
        %424 = vbcast.lane.b32.xlu0 %v394, %s423
        %v425 = vpop.permute.xlu0 %424
        %s427 = sor.u32 256, 64
        %428 = vbcast.lane.b32.xlu0 %v394, %s427
        %v429 = vpop.permute.xlu0 %428
        %s431 = sor.u32 256, 72
        %432 = vbcast.lane.b32.xlu0 %v394, %s431
        %v433 = vpop.permute.xlu0 %432
        %s435 = sor.u32 256, 80
        %436 = vbcast.lane.b32.xlu0 %v394, %s435
        %v437 = vpop.permute.xlu0 %436
        %s439 = sor.u32 256, 88
        %440 = vbcast.lane.b32.xlu0 %v394, %s439
        %v441 = vpop.permute.xlu0 %440
        %s443 = sor.u32 256, 96
        %444 = vbcast.lane.b32.xlu0 %v394, %s443
        %v445 = vpop.permute.xlu0 %444
        %s447 = sor.u32 256, 104
        %448 = vbcast.lane.b32.xlu0 %v394, %s447
        %v449 = vpop.permute.xlu0 %448
        %s451 = sor.u32 256, 112
        %452 = vbcast.lane.b32.xlu0 %v394, %s451
        %v453 = vpop.permute.xlu0 %452
        %s455 = sor.u32 256, 120
        %456 = vbcast.lane.b32.xlu0 %v394, %s455
        %v457 = vpop.permute.xlu0 %456
        %v458 = vlaneseq
        %v459 = vshrl.u32 %v458, 7
        %v460 = vsub.s32 1, %v459
        %v461 = vrot.slane %v387, %v460
        %463 = vbcast.lane.b32.xlu0 %v461, 256
        %v464 = vpop.permute.xlu0 %463
        %s466 = sor.u32 256, 8
        %467 = vbcast.lane.b32.xlu0 %v461, %s466
        %v468 = vpop.permute.xlu0 %467
        %s470 = sor.u32 256, 16
        %471 = vbcast.lane.b32.xlu0 %v461, %s470
        %v472 = vpop.permute.xlu0 %471
        %s474 = sor.u32 256, 24
        %475 = vbcast.lane.b32.xlu0 %v461, %s474
        %v476 = vpop.permute.xlu0 %475
        %s478 = sor.u32 256, 32
        %479 = vbcast.lane.b32.xlu0 %v461, %s478
        %v480 = vpop.permute.xlu0 %479
        %s482 = sor.u32 256, 40
        %483 = vbcast.lane.b32.xlu0 %v461, %s482
        %v484 = vpop.permute.xlu0 %483
        %s486 = sor.u32 256, 48
        %487 = vbcast.lane.b32.xlu0 %v461, %s486
        %v488 = vpop.permute.xlu0 %487
        %s490 = sor.u32 256, 56
        %491 = vbcast.lane.b32.xlu0 %v461, %s490
        %v492 = vpop.permute.xlu0 %491
        %s494 = sor.u32 256, 64
        %495 = vbcast.lane.b32.xlu0 %v461, %s494
        %v496 = vpop.permute.xlu0 %495
        %s498 = sor.u32 256, 72
        %499 = vbcast.lane.b32.xlu0 %v461, %s498
        %v500 = vpop.permute.xlu0 %499
        %s502 = sor.u32 256, 80
        %503 = vbcast.lane.b32.xlu0 %v461, %s502
        %v504 = vpop.permute.xlu0 %503
        %s506 = sor.u32 256, 88
        %507 = vbcast.lane.b32.xlu0 %v461, %s506
        %v508 = vpop.permute.xlu0 %507
        %s510 = sor.u32 256, 96
        %511 = vbcast.lane.b32.xlu0 %v461, %s510
        %v512 = vpop.permute.xlu0 %511
        %s514 = sor.u32 256, 104
        %515 = vbcast.lane.b32.xlu0 %v461, %s514
        %v516 = vpop.permute.xlu0 %515
        %s518 = sor.u32 256, 112
        %519 = vbcast.lane.b32.xlu0 %v461, %s518
        %v520 = vpop.permute.xlu0 %519
        %s522 = sor.u32 256, 120
        %523 = vbcast.lane.b32.xlu0 %v461, %s522
        %v524 = vpop.permute.xlu0 %523
        %v525 = vlaneseq
        %v526 = vshrl.u32 %v525, 7
        %v527 = vsub.s32 2, %v526
        %v528 = vrot.slane %v387, %v527
        %530 = vbcast.lane.b32.xlu0 %v528, 256
        %v531 = vpop.permute.xlu0 %530
        %s533 = sor.u32 256, 8
        %534 = vbcast.lane.b32.xlu0 %v528, %s533
        %v535 = vpop.permute.xlu0 %534
        %s537 = sor.u32 256, 16
        %538 = vbcast.lane.b32.xlu0 %v528, %s537
        %v539 = vpop.permute.xlu0 %538
        %s541 = sor.u32 256, 24
        %542 = vbcast.lane.b32.xlu0 %v528, %s541
        %v543 = vpop.permute.xlu0 %542
        %s545 = sor.u32 256, 32
        %546 = vbcast.lane.b32.xlu0 %v528, %s545
        %v547 = vpop.permute.xlu0 %546
        %s549 = sor.u32 256, 40
        %550 = vbcast.lane.b32.xlu0 %v528, %s549
        %v551 = vpop.permute.xlu0 %550
        %s553 = sor.u32 256, 48
        %554 = vbcast.lane.b32.xlu0 %v528, %s553
        %v555 = vpop.permute.xlu0 %554
        %s557 = sor.u32 256, 56
        %558 = vbcast.lane.b32.xlu0 %v528, %s557
        %v559 = vpop.permute.xlu0 %558
        %s561 = sor.u32 256, 64
        %562 = vbcast.lane.b32.xlu0 %v528, %s561
        %v563 = vpop.permute.xlu0 %562
        %s565 = sor.u32 256, 72
        %566 = vbcast.lane.b32.xlu0 %v528, %s565
        %v567 = vpop.permute.xlu0 %566
        %s569 = sor.u32 256, 80
        %570 = vbcast.lane.b32.xlu0 %v528, %s569
        %v571 = vpop.permute.xlu0 %570
        %s573 = sor.u32 256, 88
        %574 = vbcast.lane.b32.xlu0 %v528, %s573
        %v575 = vpop.permute.xlu0 %574
        %s577 = sor.u32 256, 96
        %578 = vbcast.lane.b32.xlu0 %v528, %s577
        %v579 = vpop.permute.xlu0 %578
        %s581 = sor.u32 256, 104
        %582 = vbcast.lane.b32.xlu0 %v528, %s581
        %v583 = vpop.permute.xlu0 %582
        %s585 = sor.u32 256, 112
        %586 = vbcast.lane.b32.xlu0 %v528, %s585
        %v587 = vpop.permute.xlu0 %586
        %s589 = sor.u32 256, 120
        %590 = vbcast.lane.b32.xlu0 %v528, %s589
        %v591 = vpop.permute.xlu0 %590
        %v592 = vlaneseq
        %v593 = vshrl.u32 %v592, 7
        %v594 = vsub.s32 3, %v593
        %v595 = vrot.slane %v387, %v594
        %597 = vbcast.lane.b32.xlu0 %v595, 256
        %v598 = vpop.permute.xlu0 %597
        %s600 = sor.u32 256, 8
        %601 = vbcast.lane.b32.xlu0 %v595, %s600
        %v602 = vpop.permute.xlu0 %601
        %s604 = sor.u32 256, 16
        %605 = vbcast.lane.b32.xlu0 %v595, %s604
        %v606 = vpop.permute.xlu0 %605
        %s608 = sor.u32 256, 24
        %609 = vbcast.lane.b32.xlu0 %v595, %s608
        %v610 = vpop.permute.xlu0 %609
        %s612 = sor.u32 256, 32
        %613 = vbcast.lane.b32.xlu0 %v595, %s612
        %v614 = vpop.permute.xlu0 %613
        %s616 = sor.u32 256, 40
        %617 = vbcast.lane.b32.xlu0 %v595, %s616
        %v618 = vpop.permute.xlu0 %617
        %s620 = sor.u32 256, 48
        %621 = vbcast.lane.b32.xlu0 %v595, %s620
        %v622 = vpop.permute.xlu0 %621
        %s624 = sor.u32 256, 56
        %625 = vbcast.lane.b32.xlu0 %v595, %s624
        %v626 = vpop.permute.xlu0 %625
        %s628 = sor.u32 256, 64
        %629 = vbcast.lane.b32.xlu0 %v595, %s628
        %v630 = vpop.permute.xlu0 %629
        %s632 = sor.u32 256, 72
        %633 = vbcast.lane.b32.xlu0 %v595, %s632
        %v634 = vpop.permute.xlu0 %633
        %s636 = sor.u32 256, 80
        %637 = vbcast.lane.b32.xlu0 %v595, %s636
        %v638 = vpop.permute.xlu0 %637
        %s640 = sor.u32 256, 88
        %641 = vbcast.lane.b32.xlu0 %v595, %s640
        %v642 = vpop.permute.xlu0 %641
        %s644 = sor.u32 256, 96
        %645 = vbcast.lane.b32.xlu0 %v595, %s644
        %v646 = vpop.permute.xlu0 %645
        %s648 = sor.u32 256, 104
        %649 = vbcast.lane.b32.xlu0 %v595, %s648
        %v650 = vpop.permute.xlu0 %649
        %s652 = sor.u32 256, 112
        %653 = vbcast.lane.b32.xlu0 %v595, %s652
        %v654 = vpop.permute.xlu0 %653
        %s656 = sor.u32 256, 120
        %657 = vbcast.lane.b32.xlu0 %v595, %s656
        %v658 = vpop.permute.xlu0 %657
        %v659 = vlaneseq
        %v660 = vshrl.u32 %v659, 7
        %v661 = vsub.s32 4, %v660
        %v662 = vrot.slane %v387, %v661
        %664 = vbcast.lane.b32.xlu0 %v662, 256
        %v665 = vpop.permute.xlu0 %664
        %s667 = sor.u32 256, 8
        %668 = vbcast.lane.b32.xlu0 %v662, %s667
        %v669 = vpop.permute.xlu0 %668
        %s671 = sor.u32 256, 16
        %672 = vbcast.lane.b32.xlu0 %v662, %s671
        %v673 = vpop.permute.xlu0 %672
        %s675 = sor.u32 256, 24
        %676 = vbcast.lane.b32.xlu0 %v662, %s675
        %v677 = vpop.permute.xlu0 %676
        %s679 = sor.u32 256, 32
        %680 = vbcast.lane.b32.xlu0 %v662, %s679
        %v681 = vpop.permute.xlu0 %680
        %s683 = sor.u32 256, 40
        %684 = vbcast.lane.b32.xlu0 %v662, %s683
        %v685 = vpop.permute.xlu0 %684
        %s687 = sor.u32 256, 48
        %688 = vbcast.lane.b32.xlu0 %v662, %s687
        %v689 = vpop.permute.xlu0 %688
        %s691 = sor.u32 256, 56
        %692 = vbcast.lane.b32.xlu0 %v662, %s691
        %v693 = vpop.permute.xlu0 %692
        %s695 = sor.u32 256, 64
        %696 = vbcast.lane.b32.xlu0 %v662, %s695
        %v697 = vpop.permute.xlu0 %696
        %s699 = sor.u32 256, 72
        %700 = vbcast.lane.b32.xlu0 %v662, %s699
        %v701 = vpop.permute.xlu0 %700
        %s703 = sor.u32 256, 80
        %704 = vbcast.lane.b32.xlu0 %v662, %s703
        %v705 = vpop.permute.xlu0 %704
        %s707 = sor.u32 256, 88
        %708 = vbcast.lane.b32.xlu0 %v662, %s707
        %v709 = vpop.permute.xlu0 %708
        %s711 = sor.u32 256, 96
        %712 = vbcast.lane.b32.xlu0 %v662, %s711
        %v713 = vpop.permute.xlu0 %712
        %s715 = sor.u32 256, 104
        %716 = vbcast.lane.b32.xlu0 %v662, %s715
        %v717 = vpop.permute.xlu0 %716
        %s719 = sor.u32 256, 112
        %720 = vbcast.lane.b32.xlu0 %v662, %s719
        %v721 = vpop.permute.xlu0 %720
        %s723 = sor.u32 256, 120
        %724 = vbcast.lane.b32.xlu0 %v662, %s723
        %v725 = vpop.permute.xlu0 %724
        %v726 = vlaneseq
        %v727 = vshrl.u32 %v726, 7
        %v728 = vsub.s32 5, %v727
        %v729 = vrot.slane %v387, %v728
        %731 = vbcast.lane.b32.xlu0 %v729, 256
        %v732 = vpop.permute.xlu0 %731
        %s734 = sor.u32 256, 8
        %735 = vbcast.lane.b32.xlu0 %v729, %s734
        %v736 = vpop.permute.xlu0 %735
        %s738 = sor.u32 256, 16
        %739 = vbcast.lane.b32.xlu0 %v729, %s738
        %v740 = vpop.permute.xlu0 %739
        %s742 = sor.u32 256, 24
        %743 = vbcast.lane.b32.xlu0 %v729, %s742
        %v744 = vpop.permute.xlu0 %743
        %s746 = sor.u32 256, 32
        %747 = vbcast.lane.b32.xlu0 %v729, %s746
        %v748 = vpop.permute.xlu0 %747
        %s750 = sor.u32 256, 40
        %751 = vbcast.lane.b32.xlu0 %v729, %s750
        %v752 = vpop.permute.xlu0 %751
        %s754 = sor.u32 256, 48
        %755 = vbcast.lane.b32.xlu0 %v729, %s754
        %v756 = vpop.permute.xlu0 %755
        %s758 = sor.u32 256, 56
        %759 = vbcast.lane.b32.xlu0 %v729, %s758
        %v760 = vpop.permute.xlu0 %759
        %s762 = sor.u32 256, 64
        %763 = vbcast.lane.b32.xlu0 %v729, %s762
        %v764 = vpop.permute.xlu0 %763
        %s766 = sor.u32 256, 72
        %767 = vbcast.lane.b32.xlu0 %v729, %s766
        %v768 = vpop.permute.xlu0 %767
        %s770 = sor.u32 256, 80
        %771 = vbcast.lane.b32.xlu0 %v729, %s770
        %v772 = vpop.permute.xlu0 %771
        %s774 = sor.u32 256, 88
        %775 = vbcast.lane.b32.xlu0 %v729, %s774
        %v776 = vpop.permute.xlu0 %775
        %s778 = sor.u32 256, 96
        %779 = vbcast.lane.b32.xlu0 %v729, %s778
        %v780 = vpop.permute.xlu0 %779
        %s782 = sor.u32 256, 104
        %783 = vbcast.lane.b32.xlu0 %v729, %s782
        %v784 = vpop.permute.xlu0 %783
        %s786 = sor.u32 256, 112
        %787 = vbcast.lane.b32.xlu0 %v729, %s786
        %v788 = vpop.permute.xlu0 %787
        %s790 = sor.u32 256, 120
        %791 = vbcast.lane.b32.xlu0 %v729, %s790
        %v792 = vpop.permute.xlu0 %791
        %v793 = vlaneseq
        %v794 = vshrl.u32 %v793, 7
        %v795 = vsub.s32 6, %v794
        %v796 = vrot.slane %v387, %v795
        %798 = vbcast.lane.b32.xlu0 %v796, 256
        %v799 = vpop.permute.xlu0 %798
        %s801 = sor.u32 256, 8
        %802 = vbcast.lane.b32.xlu0 %v796, %s801
        %v803 = vpop.permute.xlu0 %802
        %s805 = sor.u32 256, 16
        %806 = vbcast.lane.b32.xlu0 %v796, %s805
        %v807 = vpop.permute.xlu0 %806
        %s809 = sor.u32 256, 24
        %810 = vbcast.lane.b32.xlu0 %v796, %s809
        %v811 = vpop.permute.xlu0 %810
        %s813 = sor.u32 256, 32
        %814 = vbcast.lane.b32.xlu0 %v796, %s813
        %v815 = vpop.permute.xlu0 %814
        %s817 = sor.u32 256, 40
        %818 = vbcast.lane.b32.xlu0 %v796, %s817
        %v819 = vpop.permute.xlu0 %818
        %s821 = sor.u32 256, 48
        %822 = vbcast.lane.b32.xlu0 %v796, %s821
        %v823 = vpop.permute.xlu0 %822
        %s825 = sor.u32 256, 56
        %826 = vbcast.lane.b32.xlu0 %v796, %s825
        %v827 = vpop.permute.xlu0 %826
        %s829 = sor.u32 256, 64
        %830 = vbcast.lane.b32.xlu0 %v796, %s829
        %v831 = vpop.permute.xlu0 %830
        %s833 = sor.u32 256, 72
        %834 = vbcast.lane.b32.xlu0 %v796, %s833
        %v835 = vpop.permute.xlu0 %834
        %s837 = sor.u32 256, 80
        %838 = vbcast.lane.b32.xlu0 %v796, %s837
        %v839 = vpop.permute.xlu0 %838
        %s841 = sor.u32 256, 88
        %842 = vbcast.lane.b32.xlu0 %v796, %s841
        %v843 = vpop.permute.xlu0 %842
        %s845 = sor.u32 256, 96
        %846 = vbcast.lane.b32.xlu0 %v796, %s845
        %v847 = vpop.permute.xlu0 %846
        %s849 = sor.u32 256, 104
        %850 = vbcast.lane.b32.xlu0 %v796, %s849
        %v851 = vpop.permute.xlu0 %850
        %s853 = sor.u32 256, 112
        %854 = vbcast.lane.b32.xlu0 %v796, %s853
        %v855 = vpop.permute.xlu0 %854
        %s857 = sor.u32 256, 120
        %858 = vbcast.lane.b32.xlu0 %v796, %s857
        %v859 = vpop.permute.xlu0 %858
        %v860 = vlaneseq
        %v861 = vshrl.u32 %v860, 7
        %v862 = vsub.s32 7, %v861
        %v863 = vrot.slane %v387, %v862
        %865 = vbcast.lane.b32.xlu0 %v863, 256
        %v866 = vpop.permute.xlu0 %865
        %s868 = sor.u32 256, 8
        %869 = vbcast.lane.b32.xlu0 %v863, %s868
        %v870 = vpop.permute.xlu0 %869
        %s872 = sor.u32 256, 16
        %873 = vbcast.lane.b32.xlu0 %v863, %s872
        %v874 = vpop.permute.xlu0 %873
        %s876 = sor.u32 256, 24
        %877 = vbcast.lane.b32.xlu0 %v863, %s876
        %v878 = vpop.permute.xlu0 %877
        %s880 = sor.u32 256, 32
        %881 = vbcast.lane.b32.xlu0 %v863, %s880
        %v882 = vpop.permute.xlu0 %881
        %s884 = sor.u32 256, 40
        %885 = vbcast.lane.b32.xlu0 %v863, %s884
        %v886 = vpop.permute.xlu0 %885
        %s888 = sor.u32 256, 48
        %889 = vbcast.lane.b32.xlu0 %v863, %s888
        %v890 = vpop.permute.xlu0 %889
        %s892 = sor.u32 256, 56
        %893 = vbcast.lane.b32.xlu0 %v863, %s892
        %v894 = vpop.permute.xlu0 %893
        %s896 = sor.u32 256, 64
        %897 = vbcast.lane.b32.xlu0 %v863, %s896
        %v898 = vpop.permute.xlu0 %897
        %s900 = sor.u32 256, 72
        %901 = vbcast.lane.b32.xlu0 %v863, %s900
        %v902 = vpop.permute.xlu0 %901
        %s904 = sor.u32 256, 80
        %905 = vbcast.lane.b32.xlu0 %v863, %s904
        %v906 = vpop.permute.xlu0 %905
        %s908 = sor.u32 256, 88
        %909 = vbcast.lane.b32.xlu0 %v863, %s908
        %v910 = vpop.permute.xlu0 %909
        %s912 = sor.u32 256, 96
        %913 = vbcast.lane.b32.xlu0 %v863, %s912
        %v914 = vpop.permute.xlu0 %913
        %s916 = sor.u32 256, 104
        %917 = vbcast.lane.b32.xlu0 %v863, %s916
        %v918 = vpop.permute.xlu0 %917
        %s920 = sor.u32 256, 112
        %921 = vbcast.lane.b32.xlu0 %v863, %s920
        %v922 = vpop.permute.xlu0 %921
        %s924 = sor.u32 256, 120
        %925 = vbcast.lane.b32.xlu0 %v863, %s924
        %v926 = vpop.permute.xlu0 %925
        %vm927 = vcmp.eq.s32.totalorder %v397, %v390
        %vm928 = vcmp.eq.s32.totalorder %v401, %v390
        %vm929 = vcmp.eq.s32.totalorder %v405, %v390
        %vm930 = vcmp.eq.s32.totalorder %v409, %v390
        %vm931 = vcmp.eq.s32.totalorder %v413, %v390
        %vm932 = vcmp.eq.s32.totalorder %v417, %v390
        %vm933 = vcmp.eq.s32.totalorder %v421, %v390
        %vm934 = vcmp.eq.s32.totalorder %v425, %v390
        %vm935 = vcmp.eq.s32.totalorder %v429, %v390
        %vm936 = vcmp.eq.s32.totalorder %v433, %v390
        %vm937 = vcmp.eq.s32.totalorder %v437, %v390
        %vm938 = vcmp.eq.s32.totalorder %v441, %v390
        %vm939 = vcmp.eq.s32.totalorder %v445, %v390
        %vm940 = vcmp.eq.s32.totalorder %v449, %v390
        %vm941 = vcmp.eq.s32.totalorder %v453, %v390
        %vm942 = vcmp.eq.s32.totalorder %v457, %v390
        %vm943 = vcmp.eq.s32.totalorder %v464, %v390
        %vm944 = vcmp.eq.s32.totalorder %v468, %v390
        %vm945 = vcmp.eq.s32.totalorder %v472, %v390
        %vm946 = vcmp.eq.s32.totalorder %v476, %v390
        %vm947 = vcmp.eq.s32.totalorder %v480, %v390
        %vm948 = vcmp.eq.s32.totalorder %v484, %v390
        %vm949 = vcmp.eq.s32.totalorder %v488, %v390
        %vm950 = vcmp.eq.s32.totalorder %v492, %v390
        %vm951 = vcmp.eq.s32.totalorder %v496, %v390
        %vm952 = vcmp.eq.s32.totalorder %v500, %v390
        %vm953 = vcmp.eq.s32.totalorder %v504, %v390
        %vm954 = vcmp.eq.s32.totalorder %v508, %v390
        %vm955 = vcmp.eq.s32.totalorder %v512, %v390
        %vm956 = vcmp.eq.s32.totalorder %v516, %v390
        %vm957 = vcmp.eq.s32.totalorder %v520, %v390
        %vm958 = vcmp.eq.s32.totalorder %v524, %v390
        %vm959 = vcmp.eq.s32.totalorder %v531, %v390
        %vm960 = vcmp.eq.s32.totalorder %v535, %v390
        %vm961 = vcmp.eq.s32.totalorder %v539, %v390
        %vm962 = vcmp.eq.s32.totalorder %v543, %v390
        %vm963 = vcmp.eq.s32.totalorder %v547, %v390
        %vm964 = vcmp.eq.s32.totalorder %v551, %v390
        %vm965 = vcmp.eq.s32.totalorder %v555, %v390
        %vm966 = vcmp.eq.s32.totalorder %v559, %v390
        %vm967 = vcmp.eq.s32.totalorder %v563, %v390
        %vm968 = vcmp.eq.s32.totalorder %v567, %v390
        %vm969 = vcmp.eq.s32.totalorder %v571, %v390
        %vm970 = vcmp.eq.s32.totalorder %v575, %v390
        %vm971 = vcmp.eq.s32.totalorder %v579, %v390
        %vm972 = vcmp.eq.s32.totalorder %v583, %v390
        %vm973 = vcmp.eq.s32.totalorder %v587, %v390
        %vm974 = vcmp.eq.s32.totalorder %v591, %v390
        %vm975 = vcmp.eq.s32.totalorder %v598, %v390
        %vm976 = vcmp.eq.s32.totalorder %v602, %v390
        %vm977 = vcmp.eq.s32.totalorder %v606, %v390
        %vm978 = vcmp.eq.s32.totalorder %v610, %v390
        %vm979 = vcmp.eq.s32.totalorder %v614, %v390
        %vm980 = vcmp.eq.s32.totalorder %v618, %v390
        %vm981 = vcmp.eq.s32.totalorder %v622, %v390
        %vm982 = vcmp.eq.s32.totalorder %v626, %v390
        %vm983 = vcmp.eq.s32.totalorder %v630, %v390
        %vm984 = vcmp.eq.s32.totalorder %v634, %v390
        %vm985 = vcmp.eq.s32.totalorder %v638, %v390
        %vm986 = vcmp.eq.s32.totalorder %v642, %v390
        %vm987 = vcmp.eq.s32.totalorder %v646, %v390
        %vm988 = vcmp.eq.s32.totalorder %v650, %v390
        %vm989 = vcmp.eq.s32.totalorder %v654, %v390
        %vm990 = vcmp.eq.s32.totalorder %v658, %v390
        %vm991 = vcmp.eq.s32.totalorder %v665, %v390
        %vm992 = vcmp.eq.s32.totalorder %v669, %v390
        %vm993 = vcmp.eq.s32.totalorder %v673, %v390
        %vm994 = vcmp.eq.s32.totalorder %v677, %v390
        %vm995 = vcmp.eq.s32.totalorder %v681, %v390
        %vm996 = vcmp.eq.s32.totalorder %v685, %v390
        %vm997 = vcmp.eq.s32.totalorder %v689, %v390
        %vm998 = vcmp.eq.s32.totalorder %v693, %v390
        %vm999 = vcmp.eq.s32.totalorder %v697, %v390
        %vm1000 = vcmp.eq.s32.totalorder %v701, %v390
        %vm1001 = vcmp.eq.s32.totalorder %v705, %v390
        %vm1002 = vcmp.eq.s32.totalorder %v709, %v390
        %vm1003 = vcmp.eq.s32.totalorder %v713, %v390
        %vm1004 = vcmp.eq.s32.totalorder %v717, %v390
        %vm1005 = vcmp.eq.s32.totalorder %v721, %v390
        %vm1006 = vcmp.eq.s32.totalorder %v725, %v390
        %vm1007 = vcmp.eq.s32.totalorder %v732, %v390
        %vm1008 = vcmp.eq.s32.totalorder %v736, %v390
        %vm1009 = vcmp.eq.s32.totalorder %v740, %v390
        %vm1010 = vcmp.eq.s32.totalorder %v744, %v390
        %vm1011 = vcmp.eq.s32.totalorder %v748, %v390
        %vm1012 = vcmp.eq.s32.totalorder %v752, %v390
        %vm1013 = vcmp.eq.s32.totalorder %v756, %v390
        %vm1014 = vcmp.eq.s32.totalorder %v760, %v390
        %vm1015 = vcmp.eq.s32.totalorder %v764, %v390
        %vm1016 = vcmp.eq.s32.totalorder %v768, %v390
        %vm1017 = vcmp.eq.s32.totalorder %v772, %v390
        %vm1018 = vcmp.eq.s32.totalorder %v776, %v390
        %vm1019 = vcmp.eq.s32.totalorder %v780, %v390
        %vm1020 = vcmp.eq.s32.totalorder %v784, %v390
        %vm1021 = vcmp.eq.s32.totalorder %v788, %v390
        %vm1022 = vcmp.eq.s32.totalorder %v792, %v390
        %vm1023 = vcmp.eq.s32.totalorder %v799, %v390
        %vm1024 = vcmp.eq.s32.totalorder %v803, %v390
        %vm1025 = vcmp.eq.s32.totalorder %v807, %v390
        %vm1026 = vcmp.eq.s32.totalorder %v811, %v390
        %vm1027 = vcmp.eq.s32.totalorder %v815, %v390
        %vm1028 = vcmp.eq.s32.totalorder %v819, %v390
        %vm1029 = vcmp.eq.s32.totalorder %v823, %v390
        %vm1030 = vcmp.eq.s32.totalorder %v827, %v390
        %vm1031 = vcmp.eq.s32.totalorder %v831, %v390
        %vm1032 = vcmp.eq.s32.totalorder %v835, %v390
        %vm1033 = vcmp.eq.s32.totalorder %v839, %v390
        %vm1034 = vcmp.eq.s32.totalorder %v843, %v390
        %vm1035 = vcmp.eq.s32.totalorder %v847, %v390
        %vm1036 = vcmp.eq.s32.totalorder %v851, %v390
        %vm1037 = vcmp.eq.s32.totalorder %v855, %v390
        %vm1038 = vcmp.eq.s32.totalorder %v859, %v390
        %vm1039 = vcmp.eq.s32.totalorder %v866, %v390
        %vm1040 = vcmp.eq.s32.totalorder %v870, %v390
        %vm1041 = vcmp.eq.s32.totalorder %v874, %v390
        %vm1042 = vcmp.eq.s32.totalorder %v878, %v390
        %vm1043 = vcmp.eq.s32.totalorder %v882, %v390
        %vm1044 = vcmp.eq.s32.totalorder %v886, %v390
        %vm1045 = vcmp.eq.s32.totalorder %v890, %v390
        %vm1046 = vcmp.eq.s32.totalorder %v894, %v390
        %vm1047 = vcmp.eq.s32.totalorder %v898, %v390
        %vm1048 = vcmp.eq.s32.totalorder %v902, %v390
        %vm1049 = vcmp.eq.s32.totalorder %v906, %v390
        %vm1050 = vcmp.eq.s32.totalorder %v910, %v390
        %vm1051 = vcmp.eq.s32.totalorder %v914, %v390
        %vm1052 = vcmp.eq.s32.totalorder %v918, %v390
        %vm1053 = vcmp.eq.s32.totalorder %v922, %v390
        %vm1054 = vcmp.eq.s32.totalorder %v926, %v390
        %v1055 = vsel %vm927, 1, 0
        %v1056 = vsel %vm928, 1, 0
        %v1057 = vsel %vm929, 1, 0
        %v1058 = vsel %vm930, 1, 0
        %v1059 = vsel %vm931, 1, 0
        %v1060 = vsel %vm932, 1, 0
        %v1061 = vsel %vm933, 1, 0
        %v1062 = vsel %vm934, 1, 0
        %v1063 = vsel %vm935, 1, 0
        %v1064 = vsel %vm936, 1, 0
        %v1065 = vsel %vm937, 1, 0
        %v1066 = vsel %vm938, 1, 0
        %v1067 = vsel %vm939, 1, 0
        %v1068 = vsel %vm940, 1, 0
        %v1069 = vsel %vm941, 1, 0
        %v1070 = vsel %vm942, 1, 0
        %v1071 = vsel %vm943, 1, 0
        %v1072 = vsel %vm944, 1, 0
        %v1073 = vsel %vm945, 1, 0
        %v1074 = vsel %vm946, 1, 0
        %v1075 = vsel %vm947, 1, 0
        %v1076 = vsel %vm948, 1, 0
        %v1077 = vsel %vm949, 1, 0
        %v1078 = vsel %vm950, 1, 0
        %v1079 = vsel %vm951, 1, 0
        %v1080 = vsel %vm952, 1, 0
        %v1081 = vsel %vm953, 1, 0
        %v1082 = vsel %vm954, 1, 0
        %v1083 = vsel %vm955, 1, 0
        %v1084 = vsel %vm956, 1, 0
        %v1085 = vsel %vm957, 1, 0
        %v1086 = vsel %vm958, 1, 0
        %v1087 = vsel %vm959, 1, 0
        %v1088 = vsel %vm960, 1, 0
        %v1089 = vsel %vm961, 1, 0
        %v1090 = vsel %vm962, 1, 0
        %v1091 = vsel %vm963, 1, 0
        %v1092 = vsel %vm964, 1, 0
        %v1093 = vsel %vm965, 1, 0
        %v1094 = vsel %vm966, 1, 0
        %v1095 = vsel %vm967, 1, 0
        %v1096 = vsel %vm968, 1, 0
        %v1097 = vsel %vm969, 1, 0
        %v1098 = vsel %vm970, 1, 0
        %v1099 = vsel %vm971, 1, 0
        %v1100 = vsel %vm972, 1, 0
        %v1101 = vsel %vm973, 1, 0
        %v1102 = vsel %vm974, 1, 0
        %v1103 = vsel %vm975, 1, 0
        %v1104 = vsel %vm976, 1, 0
        %v1105 = vsel %vm977, 1, 0
        %v1106 = vsel %vm978, 1, 0
        %v1107 = vsel %vm979, 1, 0
        %v1108 = vsel %vm980, 1, 0
        %v1109 = vsel %vm981, 1, 0
        %v1110 = vsel %vm982, 1, 0
        %v1111 = vsel %vm983, 1, 0
        %v1112 = vsel %vm984, 1, 0
        %v1113 = vsel %vm985, 1, 0
        %v1114 = vsel %vm986, 1, 0
        %v1115 = vsel %vm987, 1, 0
        %v1116 = vsel %vm988, 1, 0
        %v1117 = vsel %vm989, 1, 0
        %v1118 = vsel %vm990, 1, 0
        %v1119 = vsel %vm991, 1, 0
        %v1120 = vsel %vm992, 1, 0
        %v1121 = vsel %vm993, 1, 0
        %v1122 = vsel %vm994, 1, 0
        %v1123 = vsel %vm995, 1, 0
        %v1124 = vsel %vm996, 1, 0
        %v1125 = vsel %vm997, 1, 0
        %v1126 = vsel %vm998, 1, 0
        %v1127 = vsel %vm999, 1, 0
        %v1128 = vsel %vm1000, 1, 0
        %v1129 = vsel %vm1001, 1, 0
        %v1130 = vsel %vm1002, 1, 0
        %v1131 = vsel %vm1003, 1, 0
        %v1132 = vsel %vm1004, 1, 0
        %v1133 = vsel %vm1005, 1, 0
        %v1134 = vsel %vm1006, 1, 0
        %v1135 = vsel %vm1007, 1, 0
        %v1136 = vsel %vm1008, 1, 0
        %v1137 = vsel %vm1009, 1, 0
        %v1138 = vsel %vm1010, 1, 0
        %v1139 = vsel %vm1011, 1, 0
        %v1140 = vsel %vm1012, 1, 0
        %v1141 = vsel %vm1013, 1, 0
        %v1142 = vsel %vm1014, 1, 0
        %v1143 = vsel %vm1015, 1, 0
        %v1144 = vsel %vm1016, 1, 0
        %v1145 = vsel %vm1017, 1, 0
        %v1146 = vsel %vm1018, 1, 0
        %v1147 = vsel %vm1019, 1, 0
        %v1148 = vsel %vm1020, 1, 0
        %v1149 = vsel %vm1021, 1, 0
        %v1150 = vsel %vm1022, 1, 0
        %v1151 = vsel %vm1023, 1, 0
        %v1152 = vsel %vm1024, 1, 0
        %v1153 = vsel %vm1025, 1, 0
        %v1154 = vsel %vm1026, 1, 0
        %v1155 = vsel %vm1027, 1, 0
        %v1156 = vsel %vm1028, 1, 0
        %v1157 = vsel %vm1029, 1, 0
        %v1158 = vsel %vm1030, 1, 0
        %v1159 = vsel %vm1031, 1, 0
        %v1160 = vsel %vm1032, 1, 0
        %v1161 = vsel %vm1033, 1, 0
        %v1162 = vsel %vm1034, 1, 0
        %v1163 = vsel %vm1035, 1, 0
        %v1164 = vsel %vm1036, 1, 0
        %v1165 = vsel %vm1037, 1, 0
        %v1166 = vsel %vm1038, 1, 0
        %v1167 = vsel %vm1039, 1, 0
        %v1168 = vsel %vm1040, 1, 0
        %v1169 = vsel %vm1041, 1, 0
        %v1170 = vsel %vm1042, 1, 0
        %v1171 = vsel %vm1043, 1, 0
        %v1172 = vsel %vm1044, 1, 0
        %v1173 = vsel %vm1045, 1, 0
        %v1174 = vsel %vm1046, 1, 0
        %v1175 = vsel %vm1047, 1, 0
        %v1176 = vsel %vm1048, 1, 0
        %v1177 = vsel %vm1049, 1, 0
        %v1178 = vsel %vm1050, 1, 0
        %v1179 = vsel %vm1051, 1, 0
        %v1180 = vsel %vm1052, 1, 0
        %v1181 = vsel %vm1053, 1, 0
        %v1182 = vsel %vm1054, 1, 0
        %v1183 = vcvt.s32.f32 %v1055
        %v1184 = vcvt.s32.f32 %v1056
        %v1185 = vcvt.s32.f32 %v1057
        %v1186 = vcvt.s32.f32 %v1058
        %v1187 = vcvt.s32.f32 %v1059
        %v1188 = vcvt.s32.f32 %v1060
        %v1189 = vcvt.s32.f32 %v1061
        %v1190 = vcvt.s32.f32 %v1062
        %v1191 = vcvt.s32.f32 %v1063
        %v1192 = vcvt.s32.f32 %v1064
        %v1193 = vcvt.s32.f32 %v1065
        %v1194 = vcvt.s32.f32 %v1066
        %v1195 = vcvt.s32.f32 %v1067
        %v1196 = vcvt.s32.f32 %v1068
        %v1197 = vcvt.s32.f32 %v1069
        %v1198 = vcvt.s32.f32 %v1070
        %v1199 = vcvt.s32.f32 %v1071
        %v1200 = vcvt.s32.f32 %v1072
        %v1201 = vcvt.s32.f32 %v1073
        %v1202 = vcvt.s32.f32 %v1074
        %v1203 = vcvt.s32.f32 %v1075
        %v1204 = vcvt.s32.f32 %v1076
        %v1205 = vcvt.s32.f32 %v1077
        %v1206 = vcvt.s32.f32 %v1078
        %v1207 = vcvt.s32.f32 %v1079
        %v1208 = vcvt.s32.f32 %v1080
        %v1209 = vcvt.s32.f32 %v1081
        %v1210 = vcvt.s32.f32 %v1082
        %v1211 = vcvt.s32.f32 %v1083
        %v1212 = vcvt.s32.f32 %v1084
        %v1213 = vcvt.s32.f32 %v1085
        %v1214 = vcvt.s32.f32 %v1086
        %v1215 = vcvt.s32.f32 %v1087
        %v1216 = vcvt.s32.f32 %v1088
        %v1217 = vcvt.s32.f32 %v1089
        %v1218 = vcvt.s32.f32 %v1090
        %v1219 = vcvt.s32.f32 %v1091
        %v1220 = vcvt.s32.f32 %v1092
        %v1221 = vcvt.s32.f32 %v1093
        %v1222 = vcvt.s32.f32 %v1094
        %v1223 = vcvt.s32.f32 %v1095
        %v1224 = vcvt.s32.f32 %v1096
        %v1225 = vcvt.s32.f32 %v1097
        %v1226 = vcvt.s32.f32 %v1098
        %v1227 = vcvt.s32.f32 %v1099
        %v1228 = vcvt.s32.f32 %v1100
        %v1229 = vcvt.s32.f32 %v1101
        %v1230 = vcvt.s32.f32 %v1102
        %v1231 = vcvt.s32.f32 %v1103
        %v1232 = vcvt.s32.f32 %v1104
        %v1233 = vcvt.s32.f32 %v1105
        %v1234 = vcvt.s32.f32 %v1106
        %v1235 = vcvt.s32.f32 %v1107
        %v1236 = vcvt.s32.f32 %v1108
        %v1237 = vcvt.s32.f32 %v1109
        %v1238 = vcvt.s32.f32 %v1110
        %v1239 = vcvt.s32.f32 %v1111
        %v1240 = vcvt.s32.f32 %v1112
        %v1241 = vcvt.s32.f32 %v1113
        %v1242 = vcvt.s32.f32 %v1114
        %v1243 = vcvt.s32.f32 %v1115
        %v1244 = vcvt.s32.f32 %v1116
        %v1245 = vcvt.s32.f32 %v1117
        %v1246 = vcvt.s32.f32 %v1118
        %v1247 = vcvt.s32.f32 %v1119
        %v1248 = vcvt.s32.f32 %v1120
        %v1249 = vcvt.s32.f32 %v1121
        %v1250 = vcvt.s32.f32 %v1122
        %v1251 = vcvt.s32.f32 %v1123
        %v1252 = vcvt.s32.f32 %v1124
        %v1253 = vcvt.s32.f32 %v1125
        %v1254 = vcvt.s32.f32 %v1126
        %v1255 = vcvt.s32.f32 %v1127
        %v1256 = vcvt.s32.f32 %v1128
        %v1257 = vcvt.s32.f32 %v1129
        %v1258 = vcvt.s32.f32 %v1130
        %v1259 = vcvt.s32.f32 %v1131
        %v1260 = vcvt.s32.f32 %v1132
        %v1261 = vcvt.s32.f32 %v1133
        %v1262 = vcvt.s32.f32 %v1134
        %v1263 = vcvt.s32.f32 %v1135
        %v1264 = vcvt.s32.f32 %v1136
        %v1265 = vcvt.s32.f32 %v1137
        %v1266 = vcvt.s32.f32 %v1138
        %v1267 = vcvt.s32.f32 %v1139
        %v1268 = vcvt.s32.f32 %v1140
        %v1269 = vcvt.s32.f32 %v1141
        %v1270 = vcvt.s32.f32 %v1142
        %v1271 = vcvt.s32.f32 %v1143
        %v1272 = vcvt.s32.f32 %v1144
        %v1273 = vcvt.s32.f32 %v1145
        %v1274 = vcvt.s32.f32 %v1146
        %v1275 = vcvt.s32.f32 %v1147
        %v1276 = vcvt.s32.f32 %v1148
        %v1277 = vcvt.s32.f32 %v1149
        %v1278 = vcvt.s32.f32 %v1150
        %v1279 = vcvt.s32.f32 %v1151
        %v1280 = vcvt.s32.f32 %v1152
        %v1281 = vcvt.s32.f32 %v1153
        %v1282 = vcvt.s32.f32 %v1154
        %v1283 = vcvt.s32.f32 %v1155
        %v1284 = vcvt.s32.f32 %v1156
        %v1285 = vcvt.s32.f32 %v1157
        %v1286 = vcvt.s32.f32 %v1158
        %v1287 = vcvt.s32.f32 %v1159
        %v1288 = vcvt.s32.f32 %v1160
        %v1289 = vcvt.s32.f32 %v1161
        %v1290 = vcvt.s32.f32 %v1162
        %v1291 = vcvt.s32.f32 %v1163
        %v1292 = vcvt.s32.f32 %v1164
        %v1293 = vcvt.s32.f32 %v1165
        %v1294 = vcvt.s32.f32 %v1166
        %v1295 = vcvt.s32.f32 %v1167
        %v1296 = vcvt.s32.f32 %v1168
        %v1297 = vcvt.s32.f32 %v1169
        %v1298 = vcvt.s32.f32 %v1170
        %v1299 = vcvt.s32.f32 %v1171
        %v1300 = vcvt.s32.f32 %v1172
        %v1301 = vcvt.s32.f32 %v1173
        %v1302 = vcvt.s32.f32 %v1174
        %v1303 = vcvt.s32.f32 %v1175
        %v1304 = vcvt.s32.f32 %v1176
        %v1305 = vcvt.s32.f32 %v1177
        %v1306 = vcvt.s32.f32 %v1178
        %v1307 = vcvt.s32.f32 %v1179
        %v1308 = vcvt.s32.f32 %v1180
        %v1309 = vcvt.s32.f32 %v1181
        %v1310 = vcvt.s32.f32 %v1182
        %v1311 = vpack.c.bf16 %v1184, %v1183
        %v1312 = vpack.c.bf16 %v1186, %v1185
        %v1313 = vpack.c.bf16 %v1188, %v1187
        %v1314 = vpack.c.bf16 %v1190, %v1189
        %v1315 = vpack.c.bf16 %v1192, %v1191
        %v1316 = vpack.c.bf16 %v1194, %v1193
        %v1317 = vpack.c.bf16 %v1196, %v1195
        %v1318 = vpack.c.bf16 %v1198, %v1197
        %v1319 = vpack.c.bf16 %v1200, %v1199
        %v1320 = vpack.c.bf16 %v1202, %v1201
        %v1321 = vpack.c.bf16 %v1204, %v1203
        %v1322 = vpack.c.bf16 %v1206, %v1205
        %v1323 = vpack.c.bf16 %v1208, %v1207
        %v1324 = vpack.c.bf16 %v1210, %v1209
        %v1325 = vpack.c.bf16 %v1212, %v1211
        %v1326 = vpack.c.bf16 %v1214, %v1213
        %v1327 = vpack.c.bf16 %v1216, %v1215
        %v1328 = vpack.c.bf16 %v1218, %v1217
        %v1329 = vpack.c.bf16 %v1220, %v1219
        %v1330 = vpack.c.bf16 %v1222, %v1221
        %v1331 = vpack.c.bf16 %v1224, %v1223
        %v1332 = vpack.c.bf16 %v1226, %v1225
        %v1333 = vpack.c.bf16 %v1228, %v1227
        %v1334 = vpack.c.bf16 %v1230, %v1229
        %v1335 = vpack.c.bf16 %v1232, %v1231
        %v1336 = vpack.c.bf16 %v1234, %v1233
        %v1337 = vpack.c.bf16 %v1236, %v1235
        %v1338 = vpack.c.bf16 %v1238, %v1237
        %v1339 = vpack.c.bf16 %v1240, %v1239
        %v1340 = vpack.c.bf16 %v1242, %v1241
        %v1341 = vpack.c.bf16 %v1244, %v1243
        %v1342 = vpack.c.bf16 %v1246, %v1245
        %v1343 = vpack.c.bf16 %v1248, %v1247
        %v1344 = vpack.c.bf16 %v1250, %v1249
        %v1345 = vpack.c.bf16 %v1252, %v1251
        %v1346 = vpack.c.bf16 %v1254, %v1253
        %v1347 = vpack.c.bf16 %v1256, %v1255
        %v1348 = vpack.c.bf16 %v1258, %v1257
        %v1349 = vpack.c.bf16 %v1260, %v1259
        %v1350 = vpack.c.bf16 %v1262, %v1261
        %v1351 = vpack.c.bf16 %v1264, %v1263
        %v1352 = vpack.c.bf16 %v1266, %v1265
        %v1353 = vpack.c.bf16 %v1268, %v1267
        %v1354 = vpack.c.bf16 %v1270, %v1269
        %v1355 = vpack.c.bf16 %v1272, %v1271
        %v1356 = vpack.c.bf16 %v1274, %v1273
        %v1357 = vpack.c.bf16 %v1276, %v1275
        %v1358 = vpack.c.bf16 %v1278, %v1277
        %v1359 = vpack.c.bf16 %v1280, %v1279
        %v1360 = vpack.c.bf16 %v1282, %v1281
        %v1361 = vpack.c.bf16 %v1284, %v1283
        %v1362 = vpack.c.bf16 %v1286, %v1285
        %v1363 = vpack.c.bf16 %v1288, %v1287
        %v1364 = vpack.c.bf16 %v1290, %v1289
        %v1365 = vpack.c.bf16 %v1292, %v1291
        %v1366 = vpack.c.bf16 %v1294, %v1293
        %v1367 = vpack.c.bf16 %v1296, %v1295
        %v1368 = vpack.c.bf16 %v1298, %v1297
        %v1369 = vpack.c.bf16 %v1300, %v1299
        %v1370 = vpack.c.bf16 %v1302, %v1301
        %v1371 = vpack.c.bf16 %v1304, %v1303
        %v1372 = vpack.c.bf16 %v1306, %v1305
        %v1373 = vpack.c.bf16 %v1308, %v1307
        %v1374 = vpack.c.bf16 %v1310, %v1309
        %v1375 = vlaneseq
        %v1376 = vshrl.u32 %v1375, 7
        %v1377 = vsub.s32 0, %v1376
        %v1378 = vrot.slane %v388, %v1377
        %1380 = vbcast.lane.b32.xlu0 %v1378, 256
        %v1381 = vpop.permute.xlu0 %1380
        %s1383 = sor.u32 256, 8
        %1384 = vbcast.lane.b32.xlu0 %v1378, %s1383
        %v1385 = vpop.permute.xlu0 %1384
        %s1387 = sor.u32 256, 16
        %1388 = vbcast.lane.b32.xlu0 %v1378, %s1387
        %v1389 = vpop.permute.xlu0 %1388
        %s1391 = sor.u32 256, 24
        %1392 = vbcast.lane.b32.xlu0 %v1378, %s1391
        %v1393 = vpop.permute.xlu0 %1392
        %s1395 = sor.u32 256, 32
        %1396 = vbcast.lane.b32.xlu0 %v1378, %s1395
        %v1397 = vpop.permute.xlu0 %1396
        %s1399 = sor.u32 256, 40
        %1400 = vbcast.lane.b32.xlu0 %v1378, %s1399
        %v1401 = vpop.permute.xlu0 %1400
        %s1403 = sor.u32 256, 48
        %1404 = vbcast.lane.b32.xlu0 %v1378, %s1403
        %v1405 = vpop.permute.xlu0 %1404
        %s1407 = sor.u32 256, 56
        %1408 = vbcast.lane.b32.xlu0 %v1378, %s1407
        %v1409 = vpop.permute.xlu0 %1408
        %s1411 = sor.u32 256, 64
        %1412 = vbcast.lane.b32.xlu0 %v1378, %s1411
        %v1413 = vpop.permute.xlu0 %1412
        %s1415 = sor.u32 256, 72
        %1416 = vbcast.lane.b32.xlu0 %v1378, %s1415
        %v1417 = vpop.permute.xlu0 %1416
        %s1419 = sor.u32 256, 80
        %1420 = vbcast.lane.b32.xlu0 %v1378, %s1419
        %v1421 = vpop.permute.xlu0 %1420
        %s1423 = sor.u32 256, 88
        %1424 = vbcast.lane.b32.xlu0 %v1378, %s1423
        %v1425 = vpop.permute.xlu0 %1424
        %s1427 = sor.u32 256, 96
        %1428 = vbcast.lane.b32.xlu0 %v1378, %s1427
        %v1429 = vpop.permute.xlu0 %1428
        %s1431 = sor.u32 256, 104
        %1432 = vbcast.lane.b32.xlu0 %v1378, %s1431
        %v1433 = vpop.permute.xlu0 %1432
        %s1435 = sor.u32 256, 112
        %1436 = vbcast.lane.b32.xlu0 %v1378, %s1435
        %v1437 = vpop.permute.xlu0 %1436
        %s1439 = sor.u32 256, 120
        %1440 = vbcast.lane.b32.xlu0 %v1378, %s1439
        %v1441 = vpop.permute.xlu0 %1440
        %v1442 = vlaneseq
        %v1443 = vshrl.u32 %v1442, 7
        %v1444 = vsub.s32 1, %v1443
        %v1445 = vrot.slane %v388, %v1444
        %1447 = vbcast.lane.b32.xlu0 %v1445, 256
        %v1448 = vpop.permute.xlu0 %1447
        %s1450 = sor.u32 256, 8
        %1451 = vbcast.lane.b32.xlu0 %v1445, %s1450
        %v1452 = vpop.permute.xlu0 %1451
        %s1454 = sor.u32 256, 16
        %1455 = vbcast.lane.b32.xlu0 %v1445, %s1454
        %v1456 = vpop.permute.xlu0 %1455
        %s1458 = sor.u32 256, 24
        %1459 = vbcast.lane.b32.xlu0 %v1445, %s1458
        %v1460 = vpop.permute.xlu0 %1459
        %s1462 = sor.u32 256, 32
        %1463 = vbcast.lane.b32.xlu0 %v1445, %s1462
        %v1464 = vpop.permute.xlu0 %1463
        %s1466 = sor.u32 256, 40
        %1467 = vbcast.lane.b32.xlu0 %v1445, %s1466
        %v1468 = vpop.permute.xlu0 %1467
        %s1470 = sor.u32 256, 48
        %1471 = vbcast.lane.b32.xlu0 %v1445, %s1470
        %v1472 = vpop.permute.xlu0 %1471
        %s1474 = sor.u32 256, 56
        %1475 = vbcast.lane.b32.xlu0 %v1445, %s1474
        %v1476 = vpop.permute.xlu0 %1475
        %s1478 = sor.u32 256, 64
        %1479 = vbcast.lane.b32.xlu0 %v1445, %s1478
        %v1480 = vpop.permute.xlu0 %1479
        %s1482 = sor.u32 256, 72
        %1483 = vbcast.lane.b32.xlu0 %v1445, %s1482
        %v1484 = vpop.permute.xlu0 %1483
        %s1486 = sor.u32 256, 80
        %1487 = vbcast.lane.b32.xlu0 %v1445, %s1486
        %v1488 = vpop.permute.xlu0 %1487
        %s1490 = sor.u32 256, 88
        %1491 = vbcast.lane.b32.xlu0 %v1445, %s1490
        %v1492 = vpop.permute.xlu0 %1491
        %s1494 = sor.u32 256, 96
        %1495 = vbcast.lane.b32.xlu0 %v1445, %s1494
        %v1496 = vpop.permute.xlu0 %1495
        %s1498 = sor.u32 256, 104
        %1499 = vbcast.lane.b32.xlu0 %v1445, %s1498
        %v1500 = vpop.permute.xlu0 %1499
        %s1502 = sor.u32 256, 112
        %1503 = vbcast.lane.b32.xlu0 %v1445, %s1502
        %v1504 = vpop.permute.xlu0 %1503
        %s1506 = sor.u32 256, 120
        %1507 = vbcast.lane.b32.xlu0 %v1445, %s1506
        %v1508 = vpop.permute.xlu0 %1507
        %v1509 = vlaneseq
        %v1510 = vshrl.u32 %v1509, 7
        %v1511 = vsub.s32 2, %v1510
        %v1512 = vrot.slane %v388, %v1511
        %1514 = vbcast.lane.b32.xlu0 %v1512, 256
        %v1515 = vpop.permute.xlu0 %1514
        %s1517 = sor.u32 256, 8
        %1518 = vbcast.lane.b32.xlu0 %v1512, %s1517
        %v1519 = vpop.permute.xlu0 %1518
        %s1521 = sor.u32 256, 16
        %1522 = vbcast.lane.b32.xlu0 %v1512, %s1521
        %v1523 = vpop.permute.xlu0 %1522
        %s1525 = sor.u32 256, 24
        %1526 = vbcast.lane.b32.xlu0 %v1512, %s1525
        %v1527 = vpop.permute.xlu0 %1526
        %s1529 = sor.u32 256, 32
        %1530 = vbcast.lane.b32.xlu0 %v1512, %s1529
        %v1531 = vpop.permute.xlu0 %1530
        %s1533 = sor.u32 256, 40
        %1534 = vbcast.lane.b32.xlu0 %v1512, %s1533
        %v1535 = vpop.permute.xlu0 %1534
        %s1537 = sor.u32 256, 48
        %1538 = vbcast.lane.b32.xlu0 %v1512, %s1537
        %v1539 = vpop.permute.xlu0 %1538
        %s1541 = sor.u32 256, 56
        %1542 = vbcast.lane.b32.xlu0 %v1512, %s1541
        %v1543 = vpop.permute.xlu0 %1542
        %s1545 = sor.u32 256, 64
        %1546 = vbcast.lane.b32.xlu0 %v1512, %s1545
        %v1547 = vpop.permute.xlu0 %1546
        %s1549 = sor.u32 256, 72
        %1550 = vbcast.lane.b32.xlu0 %v1512, %s1549
        %v1551 = vpop.permute.xlu0 %1550
        %s1553 = sor.u32 256, 80
        %1554 = vbcast.lane.b32.xlu0 %v1512, %s1553
        %v1555 = vpop.permute.xlu0 %1554
        %s1557 = sor.u32 256, 88
        %1558 = vbcast.lane.b32.xlu0 %v1512, %s1557
        %v1559 = vpop.permute.xlu0 %1558
        %s1561 = sor.u32 256, 96
        %1562 = vbcast.lane.b32.xlu0 %v1512, %s1561
        %v1563 = vpop.permute.xlu0 %1562
        %s1565 = sor.u32 256, 104
        %1566 = vbcast.lane.b32.xlu0 %v1512, %s1565
        %v1567 = vpop.permute.xlu0 %1566
        %s1569 = sor.u32 256, 112
        %1570 = vbcast.lane.b32.xlu0 %v1512, %s1569
        %v1571 = vpop.permute.xlu0 %1570
        %s1573 = sor.u32 256, 120
        %1574 = vbcast.lane.b32.xlu0 %v1512, %s1573
        %v1575 = vpop.permute.xlu0 %1574
        %v1576 = vlaneseq
        %v1577 = vshrl.u32 %v1576, 7
        %v1578 = vsub.s32 3, %v1577
        %v1579 = vrot.slane %v388, %v1578
        %1581 = vbcast.lane.b32.xlu0 %v1579, 256
        %v1582 = vpop.permute.xlu0 %1581
        %s1584 = sor.u32 256, 8
        %1585 = vbcast.lane.b32.xlu0 %v1579, %s1584
        %v1586 = vpop.permute.xlu0 %1585
        %s1588 = sor.u32 256, 16
        %1589 = vbcast.lane.b32.xlu0 %v1579, %s1588
        %v1590 = vpop.permute.xlu0 %1589
        %s1592 = sor.u32 256, 24
        %1593 = vbcast.lane.b32.xlu0 %v1579, %s1592
        %v1594 = vpop.permute.xlu0 %1593
        %s1596 = sor.u32 256, 32
        %1597 = vbcast.lane.b32.xlu0 %v1579, %s1596
        %v1598 = vpop.permute.xlu0 %1597
        %s1600 = sor.u32 256, 40
        %1601 = vbcast.lane.b32.xlu0 %v1579, %s1600
        %v1602 = vpop.permute.xlu0 %1601
        %s1604 = sor.u32 256, 48
        %1605 = vbcast.lane.b32.xlu0 %v1579, %s1604
        %v1606 = vpop.permute.xlu0 %1605
        %s1608 = sor.u32 256, 56
        %1609 = vbcast.lane.b32.xlu0 %v1579, %s1608
        %v1610 = vpop.permute.xlu0 %1609
        %s1612 = sor.u32 256, 64
        %1613 = vbcast.lane.b32.xlu0 %v1579, %s1612
        %v1614 = vpop.permute.xlu0 %1613
        %s1616 = sor.u32 256, 72
        %1617 = vbcast.lane.b32.xlu0 %v1579, %s1616
        %v1618 = vpop.permute.xlu0 %1617
        %s1620 = sor.u32 256, 80
        %1621 = vbcast.lane.b32.xlu0 %v1579, %s1620
        %v1622 = vpop.permute.xlu0 %1621
        %s1624 = sor.u32 256, 88
        %1625 = vbcast.lane.b32.xlu0 %v1579, %s1624
        %v1626 = vpop.permute.xlu0 %1625
        %s1628 = sor.u32 256, 96
        %1629 = vbcast.lane.b32.xlu0 %v1579, %s1628
        %v1630 = vpop.permute.xlu0 %1629
        %s1632 = sor.u32 256, 104
        %1633 = vbcast.lane.b32.xlu0 %v1579, %s1632
        %v1634 = vpop.permute.xlu0 %1633
        %s1636 = sor.u32 256, 112
        %1637 = vbcast.lane.b32.xlu0 %v1579, %s1636
        %v1638 = vpop.permute.xlu0 %1637
        %s1640 = sor.u32 256, 120
        %1641 = vbcast.lane.b32.xlu0 %v1579, %s1640
        %v1642 = vpop.permute.xlu0 %1641
        %v1643 = vlaneseq
        %v1644 = vshrl.u32 %v1643, 7
        %v1645 = vsub.s32 4, %v1644
        %v1646 = vrot.slane %v388, %v1645
        %1648 = vbcast.lane.b32.xlu0 %v1646, 256
        %v1649 = vpop.permute.xlu0 %1648
        %s1651 = sor.u32 256, 8
        %1652 = vbcast.lane.b32.xlu0 %v1646, %s1651
        %v1653 = vpop.permute.xlu0 %1652
        %s1655 = sor.u32 256, 16
        %1656 = vbcast.lane.b32.xlu0 %v1646, %s1655
        %v1657 = vpop.permute.xlu0 %1656
        %s1659 = sor.u32 256, 24
        %1660 = vbcast.lane.b32.xlu0 %v1646, %s1659
        %v1661 = vpop.permute.xlu0 %1660
        %s1663 = sor.u32 256, 32
        %1664 = vbcast.lane.b32.xlu0 %v1646, %s1663
        %v1665 = vpop.permute.xlu0 %1664
        %s1667 = sor.u32 256, 40
        %1668 = vbcast.lane.b32.xlu0 %v1646, %s1667
        %v1669 = vpop.permute.xlu0 %1668
        %s1671 = sor.u32 256, 48
        %1672 = vbcast.lane.b32.xlu0 %v1646, %s1671
        %v1673 = vpop.permute.xlu0 %1672
        %s1675 = sor.u32 256, 56
        %1676 = vbcast.lane.b32.xlu0 %v1646, %s1675
        %v1677 = vpop.permute.xlu0 %1676
        %s1679 = sor.u32 256, 64
        %1680 = vbcast.lane.b32.xlu0 %v1646, %s1679
        %v1681 = vpop.permute.xlu0 %1680
        %s1683 = sor.u32 256, 72
        %1684 = vbcast.lane.b32.xlu0 %v1646, %s1683
        %v1685 = vpop.permute.xlu0 %1684
        %s1687 = sor.u32 256, 80
        %1688 = vbcast.lane.b32.xlu0 %v1646, %s1687
        %v1689 = vpop.permute.xlu0 %1688
        %s1691 = sor.u32 256, 88
        %1692 = vbcast.lane.b32.xlu0 %v1646, %s1691
        %v1693 = vpop.permute.xlu0 %1692
        %s1695 = sor.u32 256, 96
        %1696 = vbcast.lane.b32.xlu0 %v1646, %s1695
        %v1697 = vpop.permute.xlu0 %1696
        %s1699 = sor.u32 256, 104
        %1700 = vbcast.lane.b32.xlu0 %v1646, %s1699
        %v1701 = vpop.permute.xlu0 %1700
        %s1703 = sor.u32 256, 112
        %1704 = vbcast.lane.b32.xlu0 %v1646, %s1703
        %v1705 = vpop.permute.xlu0 %1704
        %s1707 = sor.u32 256, 120
        %1708 = vbcast.lane.b32.xlu0 %v1646, %s1707
        %v1709 = vpop.permute.xlu0 %1708
        %v1710 = vlaneseq
        %v1711 = vshrl.u32 %v1710, 7
        %v1712 = vsub.s32 5, %v1711
        %v1713 = vrot.slane %v388, %v1712
        %1715 = vbcast.lane.b32.xlu0 %v1713, 256
        %v1716 = vpop.permute.xlu0 %1715
        %s1718 = sor.u32 256, 8
        %1719 = vbcast.lane.b32.xlu0 %v1713, %s1718
        %v1720 = vpop.permute.xlu0 %1719
        %s1722 = sor.u32 256, 16
        %1723 = vbcast.lane.b32.xlu0 %v1713, %s1722
        %v1724 = vpop.permute.xlu0 %1723
        %s1726 = sor.u32 256, 24
        %1727 = vbcast.lane.b32.xlu0 %v1713, %s1726
        %v1728 = vpop.permute.xlu0 %1727
        %s1730 = sor.u32 256, 32
        %1731 = vbcast.lane.b32.xlu0 %v1713, %s1730
        %v1732 = vpop.permute.xlu0 %1731
        %s1734 = sor.u32 256, 40
        %1735 = vbcast.lane.b32.xlu0 %v1713, %s1734
        %v1736 = vpop.permute.xlu0 %1735
        %s1738 = sor.u32 256, 48
        %1739 = vbcast.lane.b32.xlu0 %v1713, %s1738
        %v1740 = vpop.permute.xlu0 %1739
        %s1742 = sor.u32 256, 56
        %1743 = vbcast.lane.b32.xlu0 %v1713, %s1742
        %v1744 = vpop.permute.xlu0 %1743
        %s1746 = sor.u32 256, 64
        %1747 = vbcast.lane.b32.xlu0 %v1713, %s1746
        %v1748 = vpop.permute.xlu0 %1747
        %s1750 = sor.u32 256, 72
        %1751 = vbcast.lane.b32.xlu0 %v1713, %s1750
        %v1752 = vpop.permute.xlu0 %1751
        %s1754 = sor.u32 256, 80
        %1755 = vbcast.lane.b32.xlu0 %v1713, %s1754
        %v1756 = vpop.permute.xlu0 %1755
        %s1758 = sor.u32 256, 88
        %1759 = vbcast.lane.b32.xlu0 %v1713, %s1758
        %v1760 = vpop.permute.xlu0 %1759
        %s1762 = sor.u32 256, 96
        %1763 = vbcast.lane.b32.xlu0 %v1713, %s1762
        %v1764 = vpop.permute.xlu0 %1763
        %s1766 = sor.u32 256, 104
        %1767 = vbcast.lane.b32.xlu0 %v1713, %s1766
        %v1768 = vpop.permute.xlu0 %1767
        %s1770 = sor.u32 256, 112
        %1771 = vbcast.lane.b32.xlu0 %v1713, %s1770
        %v1772 = vpop.permute.xlu0 %1771
        %s1774 = sor.u32 256, 120
        %1775 = vbcast.lane.b32.xlu0 %v1713, %s1774
        %v1776 = vpop.permute.xlu0 %1775
        %v1777 = vlaneseq
        %v1778 = vshrl.u32 %v1777, 7
        %v1779 = vsub.s32 6, %v1778
        %v1780 = vrot.slane %v388, %v1779
        %1782 = vbcast.lane.b32.xlu0 %v1780, 256
        %v1783 = vpop.permute.xlu0 %1782
        %s1785 = sor.u32 256, 8
        %1786 = vbcast.lane.b32.xlu0 %v1780, %s1785
        %v1787 = vpop.permute.xlu0 %1786
        %s1789 = sor.u32 256, 16
        %1790 = vbcast.lane.b32.xlu0 %v1780, %s1789
        %v1791 = vpop.permute.xlu0 %1790
        %s1793 = sor.u32 256, 24
        %1794 = vbcast.lane.b32.xlu0 %v1780, %s1793
        %v1795 = vpop.permute.xlu0 %1794
        %s1797 = sor.u32 256, 32
        %1798 = vbcast.lane.b32.xlu0 %v1780, %s1797
        %v1799 = vpop.permute.xlu0 %1798
        %s1801 = sor.u32 256, 40
        %1802 = vbcast.lane.b32.xlu0 %v1780, %s1801
        %v1803 = vpop.permute.xlu0 %1802
        %s1805 = sor.u32 256, 48
        %1806 = vbcast.lane.b32.xlu0 %v1780, %s1805
        %v1807 = vpop.permute.xlu0 %1806
        %s1809 = sor.u32 256, 56
        %1810 = vbcast.lane.b32.xlu0 %v1780, %s1809
        %v1811 = vpop.permute.xlu0 %1810
        %s1813 = sor.u32 256, 64
        %1814 = vbcast.lane.b32.xlu0 %v1780, %s1813
        %v1815 = vpop.permute.xlu0 %1814
        %s1817 = sor.u32 256, 72
        %1818 = vbcast.lane.b32.xlu0 %v1780, %s1817
        %v1819 = vpop.permute.xlu0 %1818
        %s1821 = sor.u32 256, 80
        %1822 = vbcast.lane.b32.xlu0 %v1780, %s1821
        %v1823 = vpop.permute.xlu0 %1822
        %s1825 = sor.u32 256, 88
        %1826 = vbcast.lane.b32.xlu0 %v1780, %s1825
        %v1827 = vpop.permute.xlu0 %1826
        %s1829 = sor.u32 256, 96
        %1830 = vbcast.lane.b32.xlu0 %v1780, %s1829
        %v1831 = vpop.permute.xlu0 %1830
        %s1833 = sor.u32 256, 104
        %1834 = vbcast.lane.b32.xlu0 %v1780, %s1833
        %v1835 = vpop.permute.xlu0 %1834
        %s1837 = sor.u32 256, 112
        %1838 = vbcast.lane.b32.xlu0 %v1780, %s1837
        %v1839 = vpop.permute.xlu0 %1838
        %s1841 = sor.u32 256, 120
        %1842 = vbcast.lane.b32.xlu0 %v1780, %s1841
        %v1843 = vpop.permute.xlu0 %1842
        %v1844 = vlaneseq
        %v1845 = vshrl.u32 %v1844, 7
        %v1846 = vsub.s32 7, %v1845
        %v1847 = vrot.slane %v388, %v1846
        %1849 = vbcast.lane.b32.xlu0 %v1847, 256
        %v1850 = vpop.permute.xlu0 %1849
        %s1852 = sor.u32 256, 8
        %1853 = vbcast.lane.b32.xlu0 %v1847, %s1852
        %v1854 = vpop.permute.xlu0 %1853
        %s1856 = sor.u32 256, 16
        %1857 = vbcast.lane.b32.xlu0 %v1847, %s1856
        %v1858 = vpop.permute.xlu0 %1857
        %s1860 = sor.u32 256, 24
        %1861 = vbcast.lane.b32.xlu0 %v1847, %s1860
        %v1862 = vpop.permute.xlu0 %1861
        %s1864 = sor.u32 256, 32
        %1865 = vbcast.lane.b32.xlu0 %v1847, %s1864
        %v1866 = vpop.permute.xlu0 %1865
        %s1868 = sor.u32 256, 40
        %1869 = vbcast.lane.b32.xlu0 %v1847, %s1868
        %v1870 = vpop.permute.xlu0 %1869
        %s1872 = sor.u32 256, 48
        %1873 = vbcast.lane.b32.xlu0 %v1847, %s1872
        %v1874 = vpop.permute.xlu0 %1873
        %s1876 = sor.u32 256, 56
        %1877 = vbcast.lane.b32.xlu0 %v1847, %s1876
        %v1878 = vpop.permute.xlu0 %1877
        %s1880 = sor.u32 256, 64
        %1881 = vbcast.lane.b32.xlu0 %v1847, %s1880
        %v1882 = vpop.permute.xlu0 %1881
        %s1884 = sor.u32 256, 72
        %1885 = vbcast.lane.b32.xlu0 %v1847, %s1884
        %v1886 = vpop.permute.xlu0 %1885
        %s1888 = sor.u32 256, 80
        %1889 = vbcast.lane.b32.xlu0 %v1847, %s1888
        %v1890 = vpop.permute.xlu0 %1889
        %s1892 = sor.u32 256, 88
        %1893 = vbcast.lane.b32.xlu0 %v1847, %s1892
        %v1894 = vpop.permute.xlu0 %1893
        %s1896 = sor.u32 256, 96
        %1897 = vbcast.lane.b32.xlu0 %v1847, %s1896
        %v1898 = vpop.permute.xlu0 %1897
        %s1900 = sor.u32 256, 104
        %1901 = vbcast.lane.b32.xlu0 %v1847, %s1900
        %v1902 = vpop.permute.xlu0 %1901
        %s1904 = sor.u32 256, 112
        %1905 = vbcast.lane.b32.xlu0 %v1847, %s1904
        %v1906 = vpop.permute.xlu0 %1905
        %s1908 = sor.u32 256, 120
        %1909 = vbcast.lane.b32.xlu0 %v1847, %s1908
        %v1910 = vpop.permute.xlu0 %1909
        %vm1911 = vcmp.eq.s32.totalorder %v1381, %v390
        %vm1912 = vcmp.eq.s32.totalorder %v1385, %v390
        %vm1913 = vcmp.eq.s32.totalorder %v1389, %v390
        %vm1914 = vcmp.eq.s32.totalorder %v1393, %v390
        %vm1915 = vcmp.eq.s32.totalorder %v1397, %v390
        %vm1916 = vcmp.eq.s32.totalorder %v1401, %v390
        %vm1917 = vcmp.eq.s32.totalorder %v1405, %v390
        %vm1918 = vcmp.eq.s32.totalorder %v1409, %v390
        %vm1919 = vcmp.eq.s32.totalorder %v1413, %v390
        %vm1920 = vcmp.eq.s32.totalorder %v1417, %v390
        %vm1921 = vcmp.eq.s32.totalorder %v1421, %v390
        %vm1922 = vcmp.eq.s32.totalorder %v1425, %v390
        %vm1923 = vcmp.eq.s32.totalorder %v1429, %v390
        %vm1924 = vcmp.eq.s32.totalorder %v1433, %v390
        %vm1925 = vcmp.eq.s32.totalorder %v1437, %v390
        %vm1926 = vcmp.eq.s32.totalorder %v1441, %v390
        %vm1927 = vcmp.eq.s32.totalorder %v1448, %v390
        %vm1928 = vcmp.eq.s32.totalorder %v1452, %v390
        %vm1929 = vcmp.eq.s32.totalorder %v1456, %v390
        %vm1930 = vcmp.eq.s32.totalorder %v1460, %v390
        %vm1931 = vcmp.eq.s32.totalorder %v1464, %v390
        %vm1932 = vcmp.eq.s32.totalorder %v1468, %v390
        %vm1933 = vcmp.eq.s32.totalorder %v1472, %v390
        %vm1934 = vcmp.eq.s32.totalorder %v1476, %v390
        %vm1935 = vcmp.eq.s32.totalorder %v1480, %v390
        %vm1936 = vcmp.eq.s32.totalorder %v1484, %v390
        %vm1937 = vcmp.eq.s32.totalorder %v1488, %v390
        %vm1938 = vcmp.eq.s32.totalorder %v1492, %v390
        %vm1939 = vcmp.eq.s32.totalorder %v1496, %v390
        %vm1940 = vcmp.eq.s32.totalorder %v1500, %v390
        %vm1941 = vcmp.eq.s32.totalorder %v1504, %v390
        %vm1942 = vcmp.eq.s32.totalorder %v1508, %v390
        %vm1943 = vcmp.eq.s32.totalorder %v1515, %v390
        %vm1944 = vcmp.eq.s32.totalorder %v1519, %v390
        %vm1945 = vcmp.eq.s32.totalorder %v1523, %v390
        %vm1946 = vcmp.eq.s32.totalorder %v1527, %v390
        %vm1947 = vcmp.eq.s32.totalorder %v1531, %v390
        %vm1948 = vcmp.eq.s32.totalorder %v1535, %v390
        %vm1949 = vcmp.eq.s32.totalorder %v1539, %v390
        %vm1950 = vcmp.eq.s32.totalorder %v1543, %v390
        %vm1951 = vcmp.eq.s32.totalorder %v1547, %v390
        %vm1952 = vcmp.eq.s32.totalorder %v1551, %v390
        %vm1953 = vcmp.eq.s32.totalorder %v1555, %v390
        %vm1954 = vcmp.eq.s32.totalorder %v1559, %v390
        %vm1955 = vcmp.eq.s32.totalorder %v1563, %v390
        %vm1956 = vcmp.eq.s32.totalorder %v1567, %v390
        %vm1957 = vcmp.eq.s32.totalorder %v1571, %v390
        %vm1958 = vcmp.eq.s32.totalorder %v1575, %v390
        %vm1959 = vcmp.eq.s32.totalorder %v1582, %v390
        %vm1960 = vcmp.eq.s32.totalorder %v1586, %v390
        %vm1961 = vcmp.eq.s32.totalorder %v1590, %v390
        %vm1962 = vcmp.eq.s32.totalorder %v1594, %v390
        %vm1963 = vcmp.eq.s32.totalorder %v1598, %v390
        %vm1964 = vcmp.eq.s32.totalorder %v1602, %v390
        %vm1965 = vcmp.eq.s32.totalorder %v1606, %v390
        %vm1966 = vcmp.eq.s32.totalorder %v1610, %v390
        %vm1967 = vcmp.eq.s32.totalorder %v1614, %v390
        %vm1968 = vcmp.eq.s32.totalorder %v1618, %v390
        %vm1969 = vcmp.eq.s32.totalorder %v1622, %v390
        %vm1970 = vcmp.eq.s32.totalorder %v1626, %v390
        %vm1971 = vcmp.eq.s32.totalorder %v1630, %v390
        %vm1972 = vcmp.eq.s32.totalorder %v1634, %v390
        %vm1973 = vcmp.eq.s32.totalorder %v1638, %v390
        %vm1974 = vcmp.eq.s32.totalorder %v1642, %v390
        %vm1975 = vcmp.eq.s32.totalorder %v1649, %v390
        %vm1976 = vcmp.eq.s32.totalorder %v1653, %v390
        %vm1977 = vcmp.eq.s32.totalorder %v1657, %v390
        %vm1978 = vcmp.eq.s32.totalorder %v1661, %v390
        %vm1979 = vcmp.eq.s32.totalorder %v1665, %v390
        %vm1980 = vcmp.eq.s32.totalorder %v1669, %v390
        %vm1981 = vcmp.eq.s32.totalorder %v1673, %v390
        %vm1982 = vcmp.eq.s32.totalorder %v1677, %v390
        %vm1983 = vcmp.eq.s32.totalorder %v1681, %v390
        %vm1984 = vcmp.eq.s32.totalorder %v1685, %v390
        %vm1985 = vcmp.eq.s32.totalorder %v1689, %v390
        %vm1986 = vcmp.eq.s32.totalorder %v1693, %v390
        %vm1987 = vcmp.eq.s32.totalorder %v1697, %v390
        %vm1988 = vcmp.eq.s32.totalorder %v1701, %v390
        %vm1989 = vcmp.eq.s32.totalorder %v1705, %v390
        %vm1990 = vcmp.eq.s32.totalorder %v1709, %v390
        %vm1991 = vcmp.eq.s32.totalorder %v1716, %v390
        %vm1992 = vcmp.eq.s32.totalorder %v1720, %v390
        %vm1993 = vcmp.eq.s32.totalorder %v1724, %v390
        %vm1994 = vcmp.eq.s32.totalorder %v1728, %v390
        %vm1995 = vcmp.eq.s32.totalorder %v1732, %v390
        %vm1996 = vcmp.eq.s32.totalorder %v1736, %v390
        %vm1997 = vcmp.eq.s32.totalorder %v1740, %v390
        %vm1998 = vcmp.eq.s32.totalorder %v1744, %v390
        %vm1999 = vcmp.eq.s32.totalorder %v1748, %v390
        %vm2000 = vcmp.eq.s32.totalorder %v1752, %v390
        %vm2001 = vcmp.eq.s32.totalorder %v1756, %v390
        %vm2002 = vcmp.eq.s32.totalorder %v1760, %v390
        %vm2003 = vcmp.eq.s32.totalorder %v1764, %v390
        %vm2004 = vcmp.eq.s32.totalorder %v1768, %v390
        %vm2005 = vcmp.eq.s32.totalorder %v1772, %v390
        %vm2006 = vcmp.eq.s32.totalorder %v1776, %v390
        %vm2007 = vcmp.eq.s32.totalorder %v1783, %v390
        %vm2008 = vcmp.eq.s32.totalorder %v1787, %v390
        %vm2009 = vcmp.eq.s32.totalorder %v1791, %v390
        %vm2010 = vcmp.eq.s32.totalorder %v1795, %v390
        %vm2011 = vcmp.eq.s32.totalorder %v1799, %v390
        %vm2012 = vcmp.eq.s32.totalorder %v1803, %v390
        %vm2013 = vcmp.eq.s32.totalorder %v1807, %v390
        %vm2014 = vcmp.eq.s32.totalorder %v1811, %v390
        %vm2015 = vcmp.eq.s32.totalorder %v1815, %v390
        %vm2016 = vcmp.eq.s32.totalorder %v1819, %v390
        %vm2017 = vcmp.eq.s32.totalorder %v1823, %v390
        %vm2018 = vcmp.eq.s32.totalorder %v1827, %v390
        %vm2019 = vcmp.eq.s32.totalorder %v1831, %v390
        %vm2020 = vcmp.eq.s32.totalorder %v1835, %v390
        %vm2021 = vcmp.eq.s32.totalorder %v1839, %v390
        %vm2022 = vcmp.eq.s32.totalorder %v1843, %v390
        %vm2023 = vcmp.eq.s32.totalorder %v1850, %v390
        %vm2024 = vcmp.eq.s32.totalorder %v1854, %v390
        %vm2025 = vcmp.eq.s32.totalorder %v1858, %v390
        %vm2026 = vcmp.eq.s32.totalorder %v1862, %v390
        %vm2027 = vcmp.eq.s32.totalorder %v1866, %v390
        %vm2028 = vcmp.eq.s32.totalorder %v1870, %v390
        %vm2029 = vcmp.eq.s32.totalorder %v1874, %v390
        %vm2030 = vcmp.eq.s32.totalorder %v1878, %v390
        %vm2031 = vcmp.eq.s32.totalorder %v1882, %v390
        %vm2032 = vcmp.eq.s32.totalorder %v1886, %v390
        %vm2033 = vcmp.eq.s32.totalorder %v1890, %v390
        %vm2034 = vcmp.eq.s32.totalorder %v1894, %v390
        %vm2035 = vcmp.eq.s32.totalorder %v1898, %v390
        %vm2036 = vcmp.eq.s32.totalorder %v1902, %v390
        %vm2037 = vcmp.eq.s32.totalorder %v1906, %v390
        %vm2038 = vcmp.eq.s32.totalorder %v1910, %v390
        %v2039 = vsel %vm1911, 1, 0
        %v2040 = vsel %vm1912, 1, 0
        %v2041 = vsel %vm1913, 1, 0
        %v2042 = vsel %vm1914, 1, 0
        %v2043 = vsel %vm1915, 1, 0
        %v2044 = vsel %vm1916, 1, 0
        %v2045 = vsel %vm1917, 1, 0
        %v2046 = vsel %vm1918, 1, 0
        %v2047 = vsel %vm1919, 1, 0
        %v2048 = vsel %vm1920, 1, 0
        %v2049 = vsel %vm1921, 1, 0
        %v2050 = vsel %vm1922, 1, 0
        %v2051 = vsel %vm1923, 1, 0
        %v2052 = vsel %vm1924, 1, 0
        %v2053 = vsel %vm1925, 1, 0
        %v2054 = vsel %vm1926, 1, 0
        %v2055 = vsel %vm1927, 1, 0
        %v2056 = vsel %vm1928, 1, 0
        %v2057 = vsel %vm1929, 1, 0
        %v2058 = vsel %vm1930, 1, 0
        %v2059 = vsel %vm1931, 1, 0
        %v2060 = vsel %vm1932, 1, 0
        %v2061 = vsel %vm1933, 1, 0
        %v2062 = vsel %vm1934, 1, 0
        %v2063 = vsel %vm1935, 1, 0
        %v2064 = vsel %vm1936, 1, 0
        %v2065 = vsel %vm1937, 1, 0
        %v2066 = vsel %vm1938, 1, 0
        %v2067 = vsel %vm1939, 1, 0
        %v2068 = vsel %vm1940, 1, 0
        %v2069 = vsel %vm1941, 1, 0
        %v2070 = vsel %vm1942, 1, 0
        %v2071 = vsel %vm1943, 1, 0
        %v2072 = vsel %vm1944, 1, 0
        %v2073 = vsel %vm1945, 1, 0
        %v2074 = vsel %vm1946, 1, 0
        %v2075 = vsel %vm1947, 1, 0
        %v2076 = vsel %vm1948, 1, 0
        %v2077 = vsel %vm1949, 1, 0
        %v2078 = vsel %vm1950, 1, 0
        %v2079 = vsel %vm1951, 1, 0
        %v2080 = vsel %vm1952, 1, 0
        %v2081 = vsel %vm1953, 1, 0
        %v2082 = vsel %vm1954, 1, 0
        %v2083 = vsel %vm1955, 1, 0
        %v2084 = vsel %vm1956, 1, 0
        %v2085 = vsel %vm1957, 1, 0
        %v2086 = vsel %vm1958, 1, 0
        %v2087 = vsel %vm1959, 1, 0
        %v2088 = vsel %vm1960, 1, 0
        %v2089 = vsel %vm1961, 1, 0
        %v2090 = vsel %vm1962, 1, 0
        %v2091 = vsel %vm1963, 1, 0
        %v2092 = vsel %vm1964, 1, 0
        %v2093 = vsel %vm1965, 1, 0
        %v2094 = vsel %vm1966, 1, 0
        %v2095 = vsel %vm1967, 1, 0
        %v2096 = vsel %vm1968, 1, 0
        %v2097 = vsel %vm1969, 1, 0
        %v2098 = vsel %vm1970, 1, 0
        %v2099 = vsel %vm1971, 1, 0
        %v2100 = vsel %vm1972, 1, 0
        %v2101 = vsel %vm1973, 1, 0
        %v2102 = vsel %vm1974, 1, 0
        %v2103 = vsel %vm1975, 1, 0
        %v2104 = vsel %vm1976, 1, 0
        %v2105 = vsel %vm1977, 1, 0
        %v2106 = vsel %vm1978, 1, 0
        %v2107 = vsel %vm1979, 1, 0
        %v2108 = vsel %vm1980, 1, 0
        %v2109 = vsel %vm1981, 1, 0
        %v2110 = vsel %vm1982, 1, 0
        %v2111 = vsel %vm1983, 1, 0
        %v2112 = vsel %vm1984, 1, 0
        %v2113 = vsel %vm1985, 1, 0
        %v2114 = vsel %vm1986, 1, 0
        %v2115 = vsel %vm1987, 1, 0
        %v2116 = vsel %vm1988, 1, 0
        %v2117 = vsel %vm1989, 1, 0
        %v2118 = vsel %vm1990, 1, 0
        %v2119 = vsel %vm1991, 1, 0
        %v2120 = vsel %vm1992, 1, 0
        %v2121 = vsel %vm1993, 1, 0
        %v2122 = vsel %vm1994, 1, 0
        %v2123 = vsel %vm1995, 1, 0
        %v2124 = vsel %vm1996, 1, 0
        %v2125 = vsel %vm1997, 1, 0
        %v2126 = vsel %vm1998, 1, 0
        %v2127 = vsel %vm1999, 1, 0
        %v2128 = vsel %vm2000, 1, 0
        %v2129 = vsel %vm2001, 1, 0
        %v2130 = vsel %vm2002, 1, 0
        %v2131 = vsel %vm2003, 1, 0
        %v2132 = vsel %vm2004, 1, 0
        %v2133 = vsel %vm2005, 1, 0
        %v2134 = vsel %vm2006, 1, 0
        %v2135 = vsel %vm2007, 1, 0
        %v2136 = vsel %vm2008, 1, 0
        %v2137 = vsel %vm2009, 1, 0
        %v2138 = vsel %vm2010, 1, 0
        %v2139 = vsel %vm2011, 1, 0
        %v2140 = vsel %vm2012, 1, 0
        %v2141 = vsel %vm2013, 1, 0
        %v2142 = vsel %vm2014, 1, 0
        %v2143 = vsel %vm2015, 1, 0
        %v2144 = vsel %vm2016, 1, 0
        %v2145 = vsel %vm2017, 1, 0
        %v2146 = vsel %vm2018, 1, 0
        %v2147 = vsel %vm2019, 1, 0
        %v2148 = vsel %vm2020, 1, 0
        %v2149 = vsel %vm2021, 1, 0
        %v2150 = vsel %vm2022, 1, 0
        %v2151 = vsel %vm2023, 1, 0
        %v2152 = vsel %vm2024, 1, 0
        %v2153 = vsel %vm2025, 1, 0
        %v2154 = vsel %vm2026, 1, 0
        %v2155 = vsel %vm2027, 1, 0
        %v2156 = vsel %vm2028, 1, 0
        %v2157 = vsel %vm2029, 1, 0
        %v2158 = vsel %vm2030, 1, 0
        %v2159 = vsel %vm2031, 1, 0
        %v2160 = vsel %vm2032, 1, 0
        %v2161 = vsel %vm2033, 1, 0
        %v2162 = vsel %vm2034, 1, 0
        %v2163 = vsel %vm2035, 1, 0
        %v2164 = vsel %vm2036, 1, 0
        %v2165 = vsel %vm2037, 1, 0
        %v2166 = vsel %vm2038, 1, 0
        %v2167 = vcvt.s32.f32 %v2039
        %v2168 = vcvt.s32.f32 %v2040
        %v2169 = vcvt.s32.f32 %v2041
        %v2170 = vcvt.s32.f32 %v2042
        %v2171 = vcvt.s32.f32 %v2043
        %v2172 = vcvt.s32.f32 %v2044
        %v2173 = vcvt.s32.f32 %v2045
        %v2174 = vcvt.s32.f32 %v2046
        %v2175 = vcvt.s32.f32 %v2047
        %v2176 = vcvt.s32.f32 %v2048
        %v2177 = vcvt.s32.f32 %v2049
        %v2178 = vcvt.s32.f32 %v2050
        %v2179 = vcvt.s32.f32 %v2051
        %v2180 = vcvt.s32.f32 %v2052
        %v2181 = vcvt.s32.f32 %v2053
        %v2182 = vcvt.s32.f32 %v2054
        %v2183 = vcvt.s32.f32 %v2055
        %v2184 = vcvt.s32.f32 %v2056
        %v2185 = vcvt.s32.f32 %v2057
        %v2186 = vcvt.s32.f32 %v2058
        %v2187 = vcvt.s32.f32 %v2059
        %v2188 = vcvt.s32.f32 %v2060
        %v2189 = vcvt.s32.f32 %v2061
        %v2190 = vcvt.s32.f32 %v2062
        %v2191 = vcvt.s32.f32 %v2063
        %v2192 = vcvt.s32.f32 %v2064
        %v2193 = vcvt.s32.f32 %v2065
        %v2194 = vcvt.s32.f32 %v2066
        %v2195 = vcvt.s32.f32 %v2067
        %v2196 = vcvt.s32.f32 %v2068
        %v2197 = vcvt.s32.f32 %v2069
        %v2198 = vcvt.s32.f32 %v2070
        %v2199 = vcvt.s32.f32 %v2071
        %v2200 = vcvt.s32.f32 %v2072
        %v2201 = vcvt.s32.f32 %v2073
        %v2202 = vcvt.s32.f32 %v2074
        %v2203 = vcvt.s32.f32 %v2075
        %v2204 = vcvt.s32.f32 %v2076
        %v2205 = vcvt.s32.f32 %v2077
        %v2206 = vcvt.s32.f32 %v2078
        %v2207 = vcvt.s32.f32 %v2079
        %v2208 = vcvt.s32.f32 %v2080
        %v2209 = vcvt.s32.f32 %v2081
        %v2210 = vcvt.s32.f32 %v2082
        %v2211 = vcvt.s32.f32 %v2083
        %v2212 = vcvt.s32.f32 %v2084
        %v2213 = vcvt.s32.f32 %v2085
        %v2214 = vcvt.s32.f32 %v2086
        %v2215 = vcvt.s32.f32 %v2087
        %v2216 = vcvt.s32.f32 %v2088
        %v2217 = vcvt.s32.f32 %v2089
        %v2218 = vcvt.s32.f32 %v2090
        %v2219 = vcvt.s32.f32 %v2091
        %v2220 = vcvt.s32.f32 %v2092
        %v2221 = vcvt.s32.f32 %v2093
        %v2222 = vcvt.s32.f32 %v2094
        %v2223 = vcvt.s32.f32 %v2095
        %v2224 = vcvt.s32.f32 %v2096
        %v2225 = vcvt.s32.f32 %v2097
        %v2226 = vcvt.s32.f32 %v2098
        %v2227 = vcvt.s32.f32 %v2099
        %v2228 = vcvt.s32.f32 %v2100
        %v2229 = vcvt.s32.f32 %v2101
        %v2230 = vcvt.s32.f32 %v2102
        %v2231 = vcvt.s32.f32 %v2103
        %v2232 = vcvt.s32.f32 %v2104
        %v2233 = vcvt.s32.f32 %v2105
        %v2234 = vcvt.s32.f32 %v2106
        %v2235 = vcvt.s32.f32 %v2107
        %v2236 = vcvt.s32.f32 %v2108
        %v2237 = vcvt.s32.f32 %v2109
        %v2238 = vcvt.s32.f32 %v2110
        %v2239 = vcvt.s32.f32 %v2111
        %v2240 = vcvt.s32.f32 %v2112
        %v2241 = vcvt.s32.f32 %v2113
        %v2242 = vcvt.s32.f32 %v2114
        %v2243 = vcvt.s32.f32 %v2115
        %v2244 = vcvt.s32.f32 %v2116
        %v2245 = vcvt.s32.f32 %v2117
        %v2246 = vcvt.s32.f32 %v2118
        %v2247 = vcvt.s32.f32 %v2119
        %v2248 = vcvt.s32.f32 %v2120
        %v2249 = vcvt.s32.f32 %v2121
        %v2250 = vcvt.s32.f32 %v2122
        %v2251 = vcvt.s32.f32 %v2123
        %v2252 = vcvt.s32.f32 %v2124
        %v2253 = vcvt.s32.f32 %v2125
        %v2254 = vcvt.s32.f32 %v2126
        %v2255 = vcvt.s32.f32 %v2127
        %v2256 = vcvt.s32.f32 %v2128
        %v2257 = vcvt.s32.f32 %v2129
        %v2258 = vcvt.s32.f32 %v2130
        %v2259 = vcvt.s32.f32 %v2131
        %v2260 = vcvt.s32.f32 %v2132
        %v2261 = vcvt.s32.f32 %v2133
        %v2262 = vcvt.s32.f32 %v2134
        %v2263 = vcvt.s32.f32 %v2135
        %v2264 = vcvt.s32.f32 %v2136
        %v2265 = vcvt.s32.f32 %v2137
        %v2266 = vcvt.s32.f32 %v2138
        %v2267 = vcvt.s32.f32 %v2139
        %v2268 = vcvt.s32.f32 %v2140
        %v2269 = vcvt.s32.f32 %v2141
        %v2270 = vcvt.s32.f32 %v2142
        %v2271 = vcvt.s32.f32 %v2143
        %v2272 = vcvt.s32.f32 %v2144
        %v2273 = vcvt.s32.f32 %v2145
        %v2274 = vcvt.s32.f32 %v2146
        %v2275 = vcvt.s32.f32 %v2147
        %v2276 = vcvt.s32.f32 %v2148
        %v2277 = vcvt.s32.f32 %v2149
        %v2278 = vcvt.s32.f32 %v2150
        %v2279 = vcvt.s32.f32 %v2151
        %v2280 = vcvt.s32.f32 %v2152
        %v2281 = vcvt.s32.f32 %v2153
        %v2282 = vcvt.s32.f32 %v2154
        %v2283 = vcvt.s32.f32 %v2155
        %v2284 = vcvt.s32.f32 %v2156
        %v2285 = vcvt.s32.f32 %v2157
        %v2286 = vcvt.s32.f32 %v2158
        %v2287 = vcvt.s32.f32 %v2159
        %v2288 = vcvt.s32.f32 %v2160
        %v2289 = vcvt.s32.f32 %v2161
        %v2290 = vcvt.s32.f32 %v2162
        %v2291 = vcvt.s32.f32 %v2163
        %v2292 = vcvt.s32.f32 %v2164
        %v2293 = vcvt.s32.f32 %v2165
        %v2294 = vcvt.s32.f32 %v2166
        %v2295 = vpack.c.bf16 %v2168, %v2167
        %v2296 = vpack.c.bf16 %v2170, %v2169
        %v2297 = vpack.c.bf16 %v2172, %v2171
        %v2298 = vpack.c.bf16 %v2174, %v2173
        %v2299 = vpack.c.bf16 %v2176, %v2175
        %v2300 = vpack.c.bf16 %v2178, %v2177
        %v2301 = vpack.c.bf16 %v2180, %v2179
        %v2302 = vpack.c.bf16 %v2182, %v2181
        %v2303 = vpack.c.bf16 %v2184, %v2183
        %v2304 = vpack.c.bf16 %v2186, %v2185
        %v2305 = vpack.c.bf16 %v2188, %v2187
        %v2306 = vpack.c.bf16 %v2190, %v2189
        %v2307 = vpack.c.bf16 %v2192, %v2191
        %v2308 = vpack.c.bf16 %v2194, %v2193
        %v2309 = vpack.c.bf16 %v2196, %v2195
        %v2310 = vpack.c.bf16 %v2198, %v2197
        %v2311 = vpack.c.bf16 %v2200, %v2199
        %v2312 = vpack.c.bf16 %v2202, %v2201
        %v2313 = vpack.c.bf16 %v2204, %v2203
        %v2314 = vpack.c.bf16 %v2206, %v2205
        %v2315 = vpack.c.bf16 %v2208, %v2207
        %v2316 = vpack.c.bf16 %v2210, %v2209
        %v2317 = vpack.c.bf16 %v2212, %v2211
        %v2318 = vpack.c.bf16 %v2214, %v2213
        %v2319 = vpack.c.bf16 %v2216, %v2215
        %v2320 = vpack.c.bf16 %v2218, %v2217
        %v2321 = vpack.c.bf16 %v2220, %v2219
        %v2322 = vpack.c.bf16 %v2222, %v2221
        %v2323 = vpack.c.bf16 %v2224, %v2223
        %v2324 = vpack.c.bf16 %v2226, %v2225
        %v2325 = vpack.c.bf16 %v2228, %v2227
        %v2326 = vpack.c.bf16 %v2230, %v2229
        %v2327 = vpack.c.bf16 %v2232, %v2231
        %v2328 = vpack.c.bf16 %v2234, %v2233
        %v2329 = vpack.c.bf16 %v2236, %v2235
        %v2330 = vpack.c.bf16 %v2238, %v2237
        %v2331 = vpack.c.bf16 %v2240, %v2239
        %v2332 = vpack.c.bf16 %v2242, %v2241
        %v2333 = vpack.c.bf16 %v2244, %v2243
        %v2334 = vpack.c.bf16 %v2246, %v2245
        %v2335 = vpack.c.bf16 %v2248, %v2247
        %v2336 = vpack.c.bf16 %v2250, %v2249
        %v2337 = vpack.c.bf16 %v2252, %v2251
        %v2338 = vpack.c.bf16 %v2254, %v2253
        %v2339 = vpack.c.bf16 %v2256, %v2255
        %v2340 = vpack.c.bf16 %v2258, %v2257
        %v2341 = vpack.c.bf16 %v2260, %v2259
        %v2342 = vpack.c.bf16 %v2262, %v2261
        %v2343 = vpack.c.bf16 %v2264, %v2263
        %v2344 = vpack.c.bf16 %v2266, %v2265
        %v2345 = vpack.c.bf16 %v2268, %v2267
        %v2346 = vpack.c.bf16 %v2270, %v2269
        %v2347 = vpack.c.bf16 %v2272, %v2271
        %v2348 = vpack.c.bf16 %v2274, %v2273
        %v2349 = vpack.c.bf16 %v2276, %v2275
        %v2350 = vpack.c.bf16 %v2278, %v2277
        %v2351 = vpack.c.bf16 %v2280, %v2279
        %v2352 = vpack.c.bf16 %v2282, %v2281
        %v2353 = vpack.c.bf16 %v2284, %v2283
        %v2354 = vpack.c.bf16 %v2286, %v2285
        %v2355 = vpack.c.bf16 %v2288, %v2287
        %v2356 = vpack.c.bf16 %v2290, %v2289
        %v2357 = vpack.c.bf16 %v2292, %v2291
        %v2358 = vpack.c.bf16 %v2294, %v2293
        %v2359 = vsub.bf16 %v1311, %v2295
        %v2360 = vsub.bf16 %v1312, %v2296
        %v2361 = vsub.bf16 %v1313, %v2297
        %v2362 = vsub.bf16 %v1314, %v2298
        %v2363 = vsub.bf16 %v1315, %v2299
        %v2364 = vsub.bf16 %v1316, %v2300
        %v2365 = vsub.bf16 %v1317, %v2301
        %v2366 = vsub.bf16 %v1318, %v2302
        %v2367 = vsub.bf16 %v1319, %v2303
        %v2368 = vsub.bf16 %v1320, %v2304
        %v2369 = vsub.bf16 %v1321, %v2305
        %v2370 = vsub.bf16 %v1322, %v2306
        %v2371 = vsub.bf16 %v1323, %v2307
        %v2372 = vsub.bf16 %v1324, %v2308
        %v2373 = vsub.bf16 %v1325, %v2309
        %v2374 = vsub.bf16 %v1326, %v2310
        %v2375 = vsub.bf16 %v1327, %v2311
        %v2376 = vsub.bf16 %v1328, %v2312
        %v2377 = vsub.bf16 %v1329, %v2313
        %v2378 = vsub.bf16 %v1330, %v2314
        %v2379 = vsub.bf16 %v1331, %v2315
        %v2380 = vsub.bf16 %v1332, %v2316
        %v2381 = vsub.bf16 %v1333, %v2317
        %v2382 = vsub.bf16 %v1334, %v2318
        %v2383 = vsub.bf16 %v1335, %v2319
        %v2384 = vsub.bf16 %v1336, %v2320
        %v2385 = vsub.bf16 %v1337, %v2321
        %v2386 = vsub.bf16 %v1338, %v2322
        %v2387 = vsub.bf16 %v1339, %v2323
        %v2388 = vsub.bf16 %v1340, %v2324
        %v2389 = vsub.bf16 %v1341, %v2325
        %v2390 = vsub.bf16 %v1342, %v2326
        %v2391 = vsub.bf16 %v1343, %v2327
        %v2392 = vsub.bf16 %v1344, %v2328
        %v2393 = vsub.bf16 %v1345, %v2329
        %v2394 = vsub.bf16 %v1346, %v2330
        %v2395 = vsub.bf16 %v1347, %v2331
        %v2396 = vsub.bf16 %v1348, %v2332
        %v2397 = vsub.bf16 %v1349, %v2333
        %v2398 = vsub.bf16 %v1350, %v2334
        %v2399 = vsub.bf16 %v1351, %v2335
        %v2400 = vsub.bf16 %v1352, %v2336
        %v2401 = vsub.bf16 %v1353, %v2337
        %v2402 = vsub.bf16 %v1354, %v2338
        %v2403 = vsub.bf16 %v1355, %v2339
        %v2404 = vsub.bf16 %v1356, %v2340
        %v2405 = vsub.bf16 %v1357, %v2341
        %v2406 = vsub.bf16 %v1358, %v2342
        %v2407 = vsub.bf16 %v1359, %v2343
        %v2408 = vsub.bf16 %v1360, %v2344
        %v2409 = vsub.bf16 %v1361, %v2345
        %v2410 = vsub.bf16 %v1362, %v2346
        %v2411 = vsub.bf16 %v1363, %v2347
        %v2412 = vsub.bf16 %v1364, %v2348
        %v2413 = vsub.bf16 %v1365, %v2349
        %v2414 = vsub.bf16 %v1366, %v2350
        %v2415 = vsub.bf16 %v1367, %v2351
        %v2416 = vsub.bf16 %v1368, %v2352
        %v2417 = vsub.bf16 %v1369, %v2353
        %v2418 = vsub.bf16 %v1370, %v2354
        %v2419 = vsub.bf16 %v1371, %v2355
        %v2420 = vsub.bf16 %v1372, %v2356
        %v2421 = vsub.bf16 %v1373, %v2357
        %v2422 = vsub.bf16 %v1374, %v2358
        %v2427 = vunpack.c.l.b16 %v379
        %v2428 = vunpack.c.l.b16 %v380
        %v2429 = vunpack.c.l.b16 %v381
        %v2430 = vunpack.c.l.b16 %v382
        %v2431 = vpack.c.b16 %v2428, %v2427
        %v2432 = vpack.c.b16 %v2430, %v2429
        %2435 = vmatprep.subr.bf16.mxu0 0
        %2436 = vmatpush1.bf16.xpose.msra.mxu0 %v2366
        %2437 = vmatprep.subr.bf16.mxu0 0
        %2438 = vmatpush1.bf16.xpose.msra.mxu0 %v2365
        %2439 = vmatprep.subr.bf16.mxu0 0
        %2440 = vmatpush1.bf16.xpose.msra.mxu0 %v2364
        %2441 = vmatprep.subr.bf16.mxu0 0
        %2442 = vmatpush1.bf16.xpose.msra.mxu0 %v2363
        %2443 = vmatprep.subr.bf16.mxu0 0
        %2444 = vmatpush1.bf16.xpose.msra.mxu0 %v2362
        %2445 = vmatprep.subr.bf16.mxu0 0
        %2446 = vmatpush1.bf16.xpose.msra.mxu0 %v2361
        %2447 = vmatprep.subr.bf16.mxu0 0
        %2448 = vmatpush1.bf16.xpose.msra.mxu0 %v2360
        %2449 = vmatprep.subr.bf16.mxu0 0
        %2450 = vmatpush1.bf16.xpose.msra.mxu0 %v2359
        %2451 = vmatprep.subr.bf16.mxu0 0
        %2452 = vmatpush2.bf16.xpose.msra.mxu0 %v2374
        %2453 = vmatprep.subr.bf16.mxu0 0
        %2454 = vmatpush2.bf16.xpose.msra.mxu0 %v2373
        %2455 = vmatprep.subr.bf16.mxu0 0
        %2456 = vmatpush2.bf16.xpose.msra.mxu0 %v2372
        %2457 = vmatprep.subr.bf16.mxu0 0
        %2458 = vmatpush2.bf16.xpose.msra.mxu0 %v2371
        %2459 = vmatprep.subr.bf16.mxu0 0
        %2460 = vmatpush2.bf16.xpose.msra.mxu0 %v2370
        %2461 = vmatprep.subr.bf16.mxu0 0
        %2462 = vmatpush2.bf16.xpose.msra.mxu0 %v2369
        %2463 = vmatprep.subr.bf16.mxu0 0
        %2464 = vmatpush2.bf16.xpose.msra.mxu0 %v2368
        %2465 = vmatprep.subr.bf16.mxu0 0
        %2466 = vmatpush2.bf16.xpose.msra.mxu0 %v2367
        %2467 = vmatprep.mubr.bf16.mxu0 0
        %2468 = vmatmul.mubr.bf16.gmra.mxu0 %v2431
        %v2469 = vpop.f32.mrf.mxu0
        %v2470 = vadd.f32 0.0, %v2469
        %v2471 = vpop.f32.mrf.mxu0
        %v2472 = vadd.f32 0.0, %v2471
        %v2473 = vpop.f32.mrf.mxu0
        %v2474 = vadd.f32 0.0, %v2473
        %v2475 = vpop.f32.mrf.mxu0
        %v2476 = vadd.f32 0.0, %v2475
        %2477 = vmatprep.mubr.bf16.mxu0 0
        %2478 = vmatmul.mubr.bf16.gmra.mxu0 %v2432
        %v2479 = vpop.f32.mrf.mxu0
        %v2480 = vadd.f32 0.0, %v2479
        %v2481 = vpop.f32.mrf.mxu0
        %v2482 = vadd.f32 0.0, %v2481
        %v2483 = vpop.f32.mrf.mxu0
        %v2484 = vadd.f32 0.0, %v2483
        %v2485 = vpop.f32.mrf.mxu0
        %v2486 = vadd.f32 0.0, %v2485
        %2487 = vdwg.mxu0
        %2488 = vmatprep.subr.bf16.mxu0 0
        %2489 = vmatpush1.bf16.xpose.msra.mxu0 %v2382
        %2490 = vmatprep.subr.bf16.mxu0 0
        %2491 = vmatpush1.bf16.xpose.msra.mxu0 %v2381
        %2492 = vmatprep.subr.bf16.mxu0 0
        %2493 = vmatpush1.bf16.xpose.msra.mxu0 %v2380
        %2494 = vmatprep.subr.bf16.mxu0 0
        %2495 = vmatpush1.bf16.xpose.msra.mxu0 %v2379
        %2496 = vmatprep.subr.bf16.mxu0 0
        %2497 = vmatpush1.bf16.xpose.msra.mxu0 %v2378
        %2498 = vmatprep.subr.bf16.mxu0 0
        %2499 = vmatpush1.bf16.xpose.msra.mxu0 %v2377
        %2500 = vmatprep.subr.bf16.mxu0 0
        %2501 = vmatpush1.bf16.xpose.msra.mxu0 %v2376
        %2502 = vmatprep.subr.bf16.mxu0 0
        %2503 = vmatpush1.bf16.xpose.msra.mxu0 %v2375
        %2504 = vmatprep.subr.bf16.mxu0 0
        %2505 = vmatpush2.bf16.xpose.msra.mxu0 %v2390
        %2506 = vmatprep.subr.bf16.mxu0 0
        %2507 = vmatpush2.bf16.xpose.msra.mxu0 %v2389
        %2508 = vmatprep.subr.bf16.mxu0 0
        %2509 = vmatpush2.bf16.xpose.msra.mxu0 %v2388
        %2510 = vmatprep.subr.bf16.mxu0 0
        %2511 = vmatpush2.bf16.xpose.msra.mxu0 %v2387
        %2512 = vmatprep.subr.bf16.mxu0 0
        %2513 = vmatpush2.bf16.xpose.msra.mxu0 %v2386
        %2514 = vmatprep.subr.bf16.mxu0 0
        %2515 = vmatpush2.bf16.xpose.msra.mxu0 %v2385
        %2516 = vmatprep.subr.bf16.mxu0 0
        %2517 = vmatpush2.bf16.xpose.msra.mxu0 %v2384
        %2518 = vmatprep.subr.bf16.mxu0 0
        %2519 = vmatpush2.bf16.xpose.msra.mxu0 %v2383
        %2520 = vmatprep.mubr.bf16.mxu0 0
        %2521 = vmatmul.mubr.bf16.gmra.mxu0 %v2431
        %v2522 = vpop.f32.mrf.mxu0
        %v2523 = vadd.f32 0.0, %v2522
        %v2524 = vpop.f32.mrf.mxu0
        %v2525 = vadd.f32 0.0, %v2524
        %v2526 = vpop.f32.mrf.mxu0
        %v2527 = vadd.f32 0.0, %v2526
        %v2528 = vpop.f32.mrf.mxu0
        %v2529 = vadd.f32 0.0, %v2528
        %2530 = vmatprep.mubr.bf16.mxu0 0
        %2531 = vmatmul.mubr.bf16.gmra.mxu0 %v2432
        %v2532 = vpop.f32.mrf.mxu0
        %v2533 = vadd.f32 0.0, %v2532
        %v2534 = vpop.f32.mrf.mxu0
        %v2535 = vadd.f32 0.0, %v2534
        %v2536 = vpop.f32.mrf.mxu0
        %v2537 = vadd.f32 0.0, %v2536
        %v2538 = vpop.f32.mrf.mxu0
        %v2539 = vadd.f32 0.0, %v2538
        %2540 = vdwg.mxu0
        %2541 = vmatprep.subr.bf16.mxu0 0
        %2542 = vmatpush1.bf16.xpose.msra.mxu0 %v2398
        %2543 = vmatprep.subr.bf16.mxu0 0
        %2544 = vmatpush1.bf16.xpose.msra.mxu0 %v2397
        %2545 = vmatprep.subr.bf16.mxu0 0
        %2546 = vmatpush1.bf16.xpose.msra.mxu0 %v2396
        %2547 = vmatprep.subr.bf16.mxu0 0
        %2548 = vmatpush1.bf16.xpose.msra.mxu0 %v2395
        %2549 = vmatprep.subr.bf16.mxu0 0
        %2550 = vmatpush1.bf16.xpose.msra.mxu0 %v2394
        %2551 = vmatprep.subr.bf16.mxu0 0
        %2552 = vmatpush1.bf16.xpose.msra.mxu0 %v2393
        %2553 = vmatprep.subr.bf16.mxu0 0
        %2554 = vmatpush1.bf16.xpose.msra.mxu0 %v2392
        %2555 = vmatprep.subr.bf16.mxu0 0
        %2556 = vmatpush1.bf16.xpose.msra.mxu0 %v2391
        %2557 = vmatprep.subr.bf16.mxu0 0
        %2558 = vmatpush2.bf16.xpose.msra.mxu0 %v2406
        %2559 = vmatprep.subr.bf16.mxu0 0
        %2560 = vmatpush2.bf16.xpose.msra.mxu0 %v2405
        %2561 = vmatprep.subr.bf16.mxu0 0
        %2562 = vmatpush2.bf16.xpose.msra.mxu0 %v2404
        %2563 = vmatprep.subr.bf16.mxu0 0
        %2564 = vmatpush2.bf16.xpose.msra.mxu0 %v2403
        %2565 = vmatprep.subr.bf16.mxu0 0
        %2566 = vmatpush2.bf16.xpose.msra.mxu0 %v2402
        %2567 = vmatprep.subr.bf16.mxu0 0
        %2568 = vmatpush2.bf16.xpose.msra.mxu0 %v2401
        %2569 = vmatprep.subr.bf16.mxu0 0
        %2570 = vmatpush2.bf16.xpose.msra.mxu0 %v2400
        %2571 = vmatprep.subr.bf16.mxu0 0
        %2572 = vmatpush2.bf16.xpose.msra.mxu0 %v2399
        %2573 = vmatprep.mubr.bf16.mxu0 0
        %2574 = vmatmul.mubr.bf16.gmra.mxu0 %v2431
        %v2575 = vpop.f32.mrf.mxu0
        %v2576 = vadd.f32 0.0, %v2575
        %v2577 = vpop.f32.mrf.mxu0
        %v2578 = vadd.f32 0.0, %v2577
        %v2579 = vpop.f32.mrf.mxu0
        %v2580 = vadd.f32 0.0, %v2579
        %v2581 = vpop.f32.mrf.mxu0
        %v2582 = vadd.f32 0.0, %v2581
        %2583 = vmatprep.mubr.bf16.mxu0 0
        %2584 = vmatmul.mubr.bf16.gmra.mxu0 %v2432
        %v2585 = vpop.f32.mrf.mxu0
        %v2586 = vadd.f32 0.0, %v2585
        %v2587 = vpop.f32.mrf.mxu0
        %v2588 = vadd.f32 0.0, %v2587
        %v2589 = vpop.f32.mrf.mxu0
        %v2590 = vadd.f32 0.0, %v2589
        %v2591 = vpop.f32.mrf.mxu0
        %v2592 = vadd.f32 0.0, %v2591
        %2593 = vdwg.mxu0
        %2594 = vmatprep.subr.bf16.mxu0 0
        %2595 = vmatpush1.bf16.xpose.msra.mxu0 %v2414
        %2596 = vmatprep.subr.bf16.mxu0 0
        %2597 = vmatpush1.bf16.xpose.msra.mxu0 %v2413
        %2598 = vmatprep.subr.bf16.mxu0 0
        %2599 = vmatpush1.bf16.xpose.msra.mxu0 %v2412
        %2600 = vmatprep.subr.bf16.mxu0 0
        %2601 = vmatpush1.bf16.xpose.msra.mxu0 %v2411
        %2602 = vmatprep.subr.bf16.mxu0 0
        %2603 = vmatpush1.bf16.xpose.msra.mxu0 %v2410
        %2604 = vmatprep.subr.bf16.mxu0 0
        %2605 = vmatpush1.bf16.xpose.msra.mxu0 %v2409
        %2606 = vmatprep.subr.bf16.mxu0 0
        %2607 = vmatpush1.bf16.xpose.msra.mxu0 %v2408
        %2608 = vmatprep.subr.bf16.mxu0 0
        %2609 = vmatpush1.bf16.xpose.msra.mxu0 %v2407
        %2610 = vmatprep.subr.bf16.mxu0 0
        %2611 = vmatpush2.bf16.xpose.msra.mxu0 %v2422
        %2612 = vmatprep.subr.bf16.mxu0 0
        %2613 = vmatpush2.bf16.xpose.msra.mxu0 %v2421
        %2614 = vmatprep.subr.bf16.mxu0 0
        %2615 = vmatpush2.bf16.xpose.msra.mxu0 %v2420
        %2616 = vmatprep.subr.bf16.mxu0 0
        %2617 = vmatpush2.bf16.xpose.msra.mxu0 %v2419
        %2618 = vmatprep.subr.bf16.mxu0 0
        %2619 = vmatpush2.bf16.xpose.msra.mxu0 %v2418
        %2620 = vmatprep.subr.bf16.mxu0 0
        %2621 = vmatpush2.bf16.xpose.msra.mxu0 %v2417
        %2622 = vmatprep.subr.bf16.mxu0 0
        %2623 = vmatpush2.bf16.xpose.msra.mxu0 %v2416
        %2624 = vmatprep.subr.bf16.mxu0 0
        %2625 = vmatpush2.bf16.xpose.msra.mxu0 %v2415
        %2626 = vmatprep.mubr.bf16.mxu0 0
        %2627 = vmatmul.mubr.bf16.gmra.mxu0 %v2431
        %v2628 = vpop.f32.mrf.mxu0
        %v2629 = vadd.f32 0.0, %v2628
        %v2630 = vpop.f32.mrf.mxu0
        %v2631 = vadd.f32 0.0, %v2630
        %v2632 = vpop.f32.mrf.mxu0
        %v2633 = vadd.f32 0.0, %v2632
        %v2634 = vpop.f32.mrf.mxu0
        %v2635 = vadd.f32 0.0, %v2634
        %2636 = vmatprep.mubr.bf16.mxu0 0
        %2637 = vmatmul.mubr.bf16.gmra.mxu0 %v2432
        %v2638 = vpop.f32.mrf.mxu0
        %v2639 = vadd.f32 0.0, %v2638
        %v2640 = vpop.f32.mrf.mxu0
        %v2641 = vadd.f32 0.0, %v2640
        %v2642 = vpop.f32.mrf.mxu0
        %v2643 = vadd.f32 0.0, %v2642
        %v2644 = vpop.f32.mrf.mxu0
        %v2645 = vadd.f32 0.0, %v2644
        %2646 = vdwg.mxu0
        %v2647 = vmax.f32 %v2470, %v2472
        %v2648 = vmax.f32 %v2474, %v2476
        %v2649 = vmax.f32 %v2480, %v2482
        %v2650 = vmax.f32 %v2484, %v2486
        %v2651 = vmax.f32 %v2523, %v2525
        %v2652 = vmax.f32 %v2527, %v2529
        %v2653 = vmax.f32 %v2533, %v2535
        %v2654 = vmax.f32 %v2537, %v2539
        %v2655 = vmax.f32 %v2576, %v2578
        %v2656 = vmax.f32 %v2580, %v2582
        %v2657 = vmax.f32 %v2586, %v2588
        %v2658 = vmax.f32 %v2590, %v2592
        %v2659 = vmax.f32 %v2629, %v2631
        %v2660 = vmax.f32 %v2633, %v2635
        %v2661 = vmax.f32 %v2639, %v2641
        %v2662 = vmax.f32 %v2643, %v2645
        %v2663 = vmax.f32 %v2647, %v2651
        %v2664 = vmax.f32 %v2648, %v2652
        %v2665 = vmax.f32 %v2649, %v2653
        %v2666 = vmax.f32 %v2650, %v2654
        %v2667 = vmax.f32 %v2655, %v2659
        %v2668 = vmax.f32 %v2656, %v2660
        %v2669 = vmax.f32 %v2657, %v2661
        %v2670 = vmax.f32 %v2658, %v2662
        %v2671 = vmax.f32 %v2663, %v2667
        %v2672 = vmax.f32 %v2664, %v2668
        %v2673 = vmax.f32 %v2665, %v2669
        %v2674 = vmax.f32 %v2666, %v2670
        %v2675 = vpack.c.bf16 %v2672, %v2671
        %v2676 = vpack.c.bf16 %v2674, %v2673
        %v2677 = vld [vmem:[%s4] sm:$0xf]
        %v2678 = vld [vmem:[%s4 + $0x4] sm:$0xf]
        %v2679 = vld [vmem:[%s4 + $0x8] sm:$0xf]
        %v2680 = vld [vmem:[%s4 + $0xc] sm:$0xf]
        %v2681 = vld [vmem:[%s4 + $0x10] sm:$0xf]
        %v2682 = vld [vmem:[%s4 + $0x14] sm:$0xf]
        %v2683 = vld [vmem:[%s4 + $0x18] sm:$0xf]
        %v2684 = vld [vmem:[%s4 + $0x1c] sm:$0xf]
        %v2685 = vld [vmem:[%s5] sm:$0xf]
        %v2686 = vld [vmem:[%s5 + $0x4] sm:$0xf]
        %v2687 = vld [vmem:[%s5 + $0x8] sm:$0xf]
        %v2688 = vld [vmem:[%s5 + $0xc] sm:$0xf]
        %v2689 = vld [vmem:[%s5 + $0x10] sm:$0xf]
        %v2690 = vld [vmem:[%s5 + $0x14] sm:$0xf]
        %v2691 = vld [vmem:[%s5 + $0x18] sm:$0xf]
        %v2692 = vld [vmem:[%s5 + $0x1c] sm:$0xf]
        %v2701 = vunpack.c.l.b16 %v2685
        %v2702 = vunpack.c.l.b16 %v2686
        %v2703 = vunpack.c.l.b16 %v2687
        %v2704 = vunpack.c.l.b16 %v2688
        %v2705 = vunpack.c.l.b16 %v2689
        %v2706 = vunpack.c.l.b16 %v2690
        %v2707 = vunpack.c.l.b16 %v2691
        %v2708 = vunpack.c.l.b16 %v2692
        %v2709 = vpack.c.b16 %v2702, %v2701
        %v2710 = vpack.c.b16 %v2704, %v2703
        %v2711 = vpack.c.b16 %v2706, %v2705
        %v2712 = vpack.c.b16 %v2708, %v2707
        %vm2713 = vcmask 261120
        %v2715 = vsel %vm2713, %v2709, 0
        %v2718 = vsel %vm2713, %v2710, 0
        %v2721 = vsel %vm2713, %v2711, 0
        %v2724 = vsel %vm2713, %v2712, 0
        %2726 = vmatprep.subr.bf16.mxu0 0
        %2727 = vmatpush1.bf16.msra.mxu0 0
        %2728 = vmatprep.subr.bf16.mxu0 0
        %2729 = vmatpush1.bf16.msra.mxu0 0
        %2730 = vmatprep.subr.bf16.mxu0 0
        %2731 = vmatpush1.bf16.msra.mxu0 0
        %2732 = vmatprep.subr.bf16.mxu0 0
        %2733 = vmatpush1.bf16.msra.mxu0 0
        %2734 = vmatprep.subr.bf16.mxu0 0
        %2735 = vmatpush1.bf16.msra.mxu0 0
        %2736 = vmatprep.subr.bf16.mxu0 0
        %2737 = vmatpush1.bf16.msra.mxu0 0
        %2738 = vmatprep.subr.bf16.mxu0 0
        %2739 = vmatpush1.bf16.msra.mxu0 %v2676
        %2740 = vmatprep.subr.bf16.mxu0 0
        %2741 = vmatpush1.bf16.msra.mxu0 %v2675
        %2742 = vmatprep.subr.bf16.mxu0 0
        %2743 = vmatpush2.bf16.msra.mxu0 0
        %2744 = vmatprep.subr.bf16.mxu0 0
        %2745 = vmatpush2.bf16.msra.mxu0 0
        %2746 = vmatprep.subr.bf16.mxu0 0
        %2747 = vmatpush2.bf16.msra.mxu0 0
        %2748 = vmatprep.subr.bf16.mxu0 0
        %2749 = vmatpush2.bf16.msra.mxu0 0
        %2750 = vmatprep.subr.bf16.mxu0 0
        %2751 = vmatpush2.bf16.msra.mxu0 0
        %2752 = vmatprep.subr.bf16.mxu0 0
        %2753 = vmatpush2.bf16.msra.mxu0 0
        %2754 = vmatprep.subr.bf16.mxu0 0
        %2755 = vmatpush2.bf16.msra.mxu0 0
        %2756 = vmatprep.subr.bf16.mxu0 0
        %2757 = vmatpush2.bf16.msra.mxu0 0
        %2758 = vmatprep.mubr.bf16.mxu0 0
        %2759 = vmatmul.mubr.bf16.gmra.mxu0 %v2715
        %v2760 = vpop.f32.mrf.mxu0
        %v2761 = vadd.f32 0.0, %v2760
        %v2762 = vpop.f32.mrf.mxu0
        %v2763 = vpop.f32.mrf.mxu0
        %v2764 = vadd.f32 0.0, %v2763
        %v2765 = vpop.f32.mrf.mxu0
        %2766 = vmatprep.mubr.bf16.mxu0 0
        %2767 = vmatmul.mubr.bf16.gmra.mxu0 %v2718
        %v2768 = vpop.f32.mrf.mxu0
        %v2769 = vadd.f32 0.0, %v2768
        %v2770 = vpop.f32.mrf.mxu0
        %v2771 = vpop.f32.mrf.mxu0
        %v2772 = vadd.f32 0.0, %v2771
        %v2773 = vpop.f32.mrf.mxu0
        %2774 = vmatprep.mubr.bf16.mxu0 0
        %2775 = vmatmul.mubr.bf16.gmra.mxu0 %v2721
        %v2776 = vpop.f32.mrf.mxu0
        %v2777 = vadd.f32 0.0, %v2776
        %v2778 = vpop.f32.mrf.mxu0
        %v2779 = vpop.f32.mrf.mxu0
        %v2780 = vadd.f32 0.0, %v2779
        %v2781 = vpop.f32.mrf.mxu0
        %2782 = vmatprep.mubr.bf16.mxu0 0
        %2783 = vmatmul.mubr.bf16.gmra.mxu0 %v2724
        %v2784 = vpop.f32.mrf.mxu0
        %v2785 = vadd.f32 0.0, %v2784
        %v2786 = vpop.f32.mrf.mxu0
        %v2787 = vpop.f32.mrf.mxu0
        %v2788 = vadd.f32 0.0, %v2787
        %v2789 = vpop.f32.mrf.mxu0
        %2790 = vdwg.mxu0
        %v2799 = vunpack.c.l.b16 %v2677
        %v2800 = vunpack.c.l.b16 %v2678
        %v2801 = vunpack.c.l.b16 %v2679
        %v2802 = vunpack.c.l.b16 %v2680
        %v2803 = vunpack.c.l.b16 %v2681
        %v2804 = vunpack.c.l.b16 %v2682
        %v2805 = vunpack.c.l.b16 %v2683
        %v2806 = vunpack.c.l.b16 %v2684
        %v2807 = vpack.c.b16 %v2800, %v2799
        %v2808 = vpack.c.b16 %v2802, %v2801
        %v2809 = vpack.c.b16 %v2804, %v2803
        %v2810 = vpack.c.b16 %v2806, %v2805
        %v2815 = vunpack.c.l.b16 %v383
        %v2816 = vunpack.c.l.b16 %v384
        %v2817 = vunpack.c.l.b16 %v385
        %v2818 = vunpack.c.l.b16 %v386
        %v2819 = vpack.c.b16 %v2816, %v2815
        %v2820 = vpack.c.b16 %v2818, %v2817
        %v2824 = vsel %vm2713, %v2807, 0
        %v2827 = vsel %vm2713, %v2808, 0
        %v2830 = vsel %vm2713, %v2809, 0
        %v2833 = vsel %vm2713, %v2810, 0
        %2835 = vmatprep.subr.bf16.mxu0 0
        %2836 = vmatpush1.bf16.msra.mxu0 0
        %2837 = vmatprep.subr.bf16.mxu0 0
        %2838 = vmatpush1.bf16.msra.mxu0 0
        %2839 = vmatprep.subr.bf16.mxu0 0
        %2840 = vmatpush1.bf16.msra.mxu0 0
        %2841 = vmatprep.subr.bf16.mxu0 0
        %2842 = vmatpush1.bf16.msra.mxu0 0
        %2843 = vmatprep.subr.bf16.mxu0 0
        %2844 = vmatpush1.bf16.msra.mxu0 0
        %2845 = vmatprep.subr.bf16.mxu0 0
        %2846 = vmatpush1.bf16.msra.mxu0 0
        %2847 = vmatprep.subr.bf16.mxu0 0
        %2848 = vmatpush1.bf16.msra.mxu0 %v2820
        %2849 = vmatprep.subr.bf16.mxu0 0
        %2850 = vmatpush1.bf16.msra.mxu0 %v2819
        %2851 = vmatprep.subr.bf16.mxu0 0
        %2852 = vmatpush2.bf16.msra.mxu0 0
        %2853 = vmatprep.subr.bf16.mxu0 0
        %2854 = vmatpush2.bf16.msra.mxu0 0
        %2855 = vmatprep.subr.bf16.mxu0 0
        %2856 = vmatpush2.bf16.msra.mxu0 0
        %2857 = vmatprep.subr.bf16.mxu0 0
        %2858 = vmatpush2.bf16.msra.mxu0 0
        %2859 = vmatprep.subr.bf16.mxu0 0
        %2860 = vmatpush2.bf16.msra.mxu0 0
        %2861 = vmatprep.subr.bf16.mxu0 0
        %2862 = vmatpush2.bf16.msra.mxu0 0
        %2863 = vmatprep.subr.bf16.mxu0 0
        %2864 = vmatpush2.bf16.msra.mxu0 0
        %2865 = vmatprep.subr.bf16.mxu0 0
        %2866 = vmatpush2.bf16.msra.mxu0 0
        %2867 = vmatprep.mubr.bf16.mxu0 0
        %2868 = vmatmul.mubr.bf16.gmra.mxu0 %v2824
        %v2869 = vpop.f32.mrf.mxu0
        %v2870 = vadd.f32 %v2761, %v2869
        %v2871 = vpop.f32.mrf.mxu0
        %v2872 = vpop.f32.mrf.mxu0
        %v2873 = vadd.f32 %v2764, %v2872
        %v2874 = vpop.f32.mrf.mxu0
        %2875 = vmatprep.mubr.bf16.mxu0 0
        %2876 = vmatmul.mubr.bf16.gmra.mxu0 %v2827
        %v2877 = vpop.f32.mrf.mxu0
        %v2878 = vadd.f32 %v2769, %v2877
        %v2879 = vpop.f32.mrf.mxu0
        %v2880 = vpop.f32.mrf.mxu0
        %v2881 = vadd.f32 %v2772, %v2880
        %v2882 = vpop.f32.mrf.mxu0
        %2883 = vmatprep.mubr.bf16.mxu0 0
        %2884 = vmatmul.mubr.bf16.gmra.mxu0 %v2830
        %v2885 = vpop.f32.mrf.mxu0
        %v2886 = vadd.f32 %v2777, %v2885
        %v2887 = vpop.f32.mrf.mxu0
        %v2888 = vpop.f32.mrf.mxu0
        %v2889 = vadd.f32 %v2780, %v2888
        %v2890 = vpop.f32.mrf.mxu0
        %2891 = vmatprep.mubr.bf16.mxu0 0
        %2892 = vmatmul.mubr.bf16.gmra.mxu0 %v2833
        %v2893 = vpop.f32.mrf.mxu0
        %v2894 = vadd.f32 %v2785, %v2893
        %v2895 = vpop.f32.mrf.mxu0
        %v2896 = vpop.f32.mrf.mxu0
        %v2897 = vadd.f32 %v2788, %v2896
        %v2898 = vpop.f32.mrf.mxu0
        %2899 = vdwg.mxu0
        %v2900 = vld [vmem:[%s6] sm:$0xff]
        %v2901 = vld [vmem:[%s6 + $0x8] sm:$0xff]
        %v2902 = vld [vmem:[%s6 + $0x10] sm:$0xff]
        %v2903 = vld [vmem:[%s6 + $0x18] sm:$0xff]
        %v2904 = vld [vmem:[%s6 + $0x20] sm:$0xff]
        %v2905 = vld [vmem:[%s6 + $0x28] sm:$0xff]
        %v2906 = vld [vmem:[%s6 + $0x30] sm:$0xff]
        %v2907 = vld [vmem:[%s6 + $0x38] sm:$0xff]
        %2909 = vset.pattern.permute.xlu0 0
        %2910 = vperm.xlu0 %2909, %v2900
        %v2911 = vpop.permute.xlu0 %2910
        %2914 = vset.pattern.permute.xlu0 0
        %2915 = vperm.xlu0 %2914, %v2901
        %v2916 = vpop.permute.xlu0 %2915
        %2919 = vset.pattern.permute.xlu0 0
        %2920 = vperm.xlu0 %2919, %v2902
        %v2921 = vpop.permute.xlu0 %2920
        %2924 = vset.pattern.permute.xlu0 0
        %2925 = vperm.xlu0 %2924, %v2903
        %v2926 = vpop.permute.xlu0 %2925
        %2929 = vset.pattern.permute.xlu0 0
        %2930 = vperm.xlu0 %2929, %v2904
        %v2931 = vpop.permute.xlu0 %2930
        %2934 = vset.pattern.permute.xlu0 0
        %2935 = vperm.xlu0 %2934, %v2905
        %v2936 = vpop.permute.xlu0 %2935
        %2939 = vset.pattern.permute.xlu0 0
        %2940 = vperm.xlu0 %2939, %v2906
        %v2941 = vpop.permute.xlu0 %2940
        %2944 = vset.pattern.permute.xlu0 0
        %2945 = vperm.xlu0 %2944, %v2907
        %v2946 = vpop.permute.xlu0 %2945
        %v2948 = vadd.f32 %v2870, %v2911
        %v2949 = vadd.f32 %v2873, %v2916
        %v2950 = vadd.f32 %v2878, %v2921
        %v2951 = vadd.f32 %v2881, %v2926
        %v2952 = vadd.f32 %v2886, %v2931
        %v2953 = vadd.f32 %v2889, %v2936
        %v2954 = vadd.f32 %v2894, %v2941
        %v2955 = vadd.f32 %v2897, %v2946
        %v2956 = vmul.f32 %v2948, 0.5
        %v2957 = vmul.f32 %v2949, 0.5
        %v2958 = vmul.f32 %v2950, 0.5
        %v2959 = vmul.f32 %v2951, 0.5
        %v2960 = vmul.f32 %v2952, 0.5
        %v2961 = vmul.f32 %v2953, 0.5
        %v2962 = vmul.f32 %v2954, 0.5
        %v2963 = vmul.f32 %v2955, 0.5
        %v2964 = vmul.f32 %v2948, 0.70710677
        %v2965 = vmul.f32 %v2949, 0.70710677
        %v2966 = vmul.f32 %v2950, 0.70710677
        %v2967 = vmul.f32 %v2951, 0.70710677
        %v2968 = vmul.f32 %v2952, 0.70710677
        %v2969 = vmul.f32 %v2953, 0.70710677
        %v2970 = vmul.f32 %v2954, 0.70710677
        %v2971 = vmul.f32 %v2955, 0.70710677
        %vm2972 = vcmp.lt.f32.partialorder %v2964, 0.0
        %vm2973 = vcmp.lt.f32.partialorder %v2965, 0.0
        %vm2974 = vcmp.lt.f32.partialorder %v2966, 0.0
        %vm2975 = vcmp.lt.f32.partialorder %v2967, 0.0
        %vm2976 = vcmp.lt.f32.partialorder %v2968, 0.0
        %vm2977 = vcmp.lt.f32.partialorder %v2969, 0.0
        %vm2978 = vcmp.lt.f32.partialorder %v2970, 0.0
        %vm2979 = vcmp.lt.f32.partialorder %v2971, 0.0
        %v2980 = vsel %vm2972, -1.0, 1.0
        %v2981 = vsel %vm2973, -1.0, 1.0
        %v2982 = vsel %vm2974, -1.0, 1.0
        %v2983 = vsel %vm2975, -1.0, 1.0
        %v2984 = vsel %vm2976, -1.0, 1.0
        %v2985 = vsel %vm2977, -1.0, 1.0
        %v2986 = vsel %vm2978, -1.0, 1.0
        %v2987 = vsel %vm2979, -1.0, 1.0
        %v2988 = vand.u32 2147483647, %v2964
        %v2989 = vand.u32 2147483647, %v2965
        %v2990 = vand.u32 2147483647, %v2966
        %v2991 = vand.u32 2147483647, %v2967
        %v2992 = vand.u32 2147483647, %v2968
        %v2993 = vand.u32 2147483647, %v2969
        %v2994 = vand.u32 2147483647, %v2970
        %v2995 = vand.u32 2147483647, %v2971
        %v2996 = vmul.f32 %v2988, 0.3275911
        %v2997 = vmul.f32 %v2989, 0.3275911
        %v2998 = vmul.f32 %v2990, 0.3275911
        %v2999 = vmul.f32 %v2991, 0.3275911
        %v3000 = vmul.f32 %v2992, 0.3275911
        %v3001 = vmul.f32 %v2993, 0.3275911
        %v3002 = vmul.f32 %v2994, 0.3275911
        %v3003 = vmul.f32 %v2995, 0.3275911
        %v3004 = vadd.f32 %v2996, 1.0
        %v3005 = vadd.f32 %v2997, 1.0
        %v3006 = vadd.f32 %v2998, 1.0
        %v3007 = vadd.f32 %v2999, 1.0
        %v3008 = vadd.f32 %v3000, 1.0
        %v3009 = vadd.f32 %v3001, 1.0
        %v3010 = vadd.f32 %v3002, 1.0
        %v3011 = vadd.f32 %v3003, 1.0
        %v3012 = vrcp.pop %v3004
        %v3013 = vrcp.pop %v3005
        %v3014 = vrcp.pop %v3006
        %v3015 = vrcp.pop %v3007
        %v3016 = vrcp.pop %v3008
        %v3017 = vrcp.pop %v3009
        %v3018 = vrcp.pop %v3010
        %v3019 = vrcp.pop %v3011
        %v3020 = vmul.f32 %v3012, 1.0614054
        %v3021 = vmul.f32 %v3013, 1.0614054
        %v3022 = vmul.f32 %v3014, 1.0614054
        %v3023 = vmul.f32 %v3015, 1.0614054
        %v3024 = vmul.f32 %v3016, 1.0614054
        %v3025 = vmul.f32 %v3017, 1.0614054
        %v3026 = vmul.f32 %v3018, 1.0614054
        %v3027 = vmul.f32 %v3019, 1.0614054
        %v3028 = vadd.f32 %v3020, -1.4531521
        %v3029 = vadd.f32 %v3021, -1.4531521
        %v3030 = vadd.f32 %v3022, -1.4531521
        %v3031 = vadd.f32 %v3023, -1.4531521
        %v3032 = vadd.f32 %v3024, -1.4531521
        %v3033 = vadd.f32 %v3025, -1.4531521
        %v3034 = vadd.f32 %v3026, -1.4531521
        %v3035 = vadd.f32 %v3027, -1.4531521
        %v3036 = vmul.f32 %v3028, %v3012
        %v3037 = vmul.f32 %v3029, %v3013
        %v3038 = vmul.f32 %v3030, %v3014
        %v3039 = vmul.f32 %v3031, %v3015
        %v3040 = vmul.f32 %v3032, %v3016
        %v3041 = vmul.f32 %v3033, %v3017
        %v3042 = vmul.f32 %v3034, %v3018
        %v3043 = vmul.f32 %v3035, %v3019
        %v3044 = vadd.f32 %v3036, 1.4214138
        %v3045 = vadd.f32 %v3037, 1.4214138
        %v3046 = vadd.f32 %v3038, 1.4214138
        %v3047 = vadd.f32 %v3039, 1.4214138
        %v3048 = vadd.f32 %v3040, 1.4214138
        %v3049 = vadd.f32 %v3041, 1.4214138
        %v3050 = vadd.f32 %v3042, 1.4214138
        %v3051 = vadd.f32 %v3043, 1.4214138
        %v3052 = vmul.f32 %v3044, %v3012
        %v3053 = vmul.f32 %v3045, %v3013
        %v3054 = vmul.f32 %v3046, %v3014
        %v3055 = vmul.f32 %v3047, %v3015
        %v3056 = vmul.f32 %v3048, %v3016
        %v3057 = vmul.f32 %v3049, %v3017
        %v3058 = vmul.f32 %v3050, %v3018
        %v3059 = vmul.f32 %v3051, %v3019
        %v3060 = vadd.f32 %v3052, -0.28449672
        %v3061 = vadd.f32 %v3053, -0.28449672
        %v3062 = vadd.f32 %v3054, -0.28449672
        %v3063 = vadd.f32 %v3055, -0.28449672
        %v3064 = vadd.f32 %v3056, -0.28449672
        %v3065 = vadd.f32 %v3057, -0.28449672
        %v3066 = vadd.f32 %v3058, -0.28449672
        %v3067 = vadd.f32 %v3059, -0.28449672
        %v3068 = vmul.f32 %v3060, %v3012
        %v3069 = vmul.f32 %v3061, %v3013
        %v3070 = vmul.f32 %v3062, %v3014
        %v3071 = vmul.f32 %v3063, %v3015
        %v3072 = vmul.f32 %v3064, %v3016
        %v3073 = vmul.f32 %v3065, %v3017
        %v3074 = vmul.f32 %v3066, %v3018
        %v3075 = vmul.f32 %v3067, %v3019
        %v3076 = vadd.f32 %v3068, 0.2548296
        %v3077 = vadd.f32 %v3069, 0.2548296
        %v3078 = vadd.f32 %v3070, 0.2548296
        %v3079 = vadd.f32 %v3071, 0.2548296
        %v3080 = vadd.f32 %v3072, 0.2548296
        %v3081 = vadd.f32 %v3073, 0.2548296
        %v3082 = vadd.f32 %v3074, 0.2548296
        %v3083 = vadd.f32 %v3075, 0.2548296
        %v3084 = vmul.f32 %v3076, %v3012
        %v3085 = vmul.f32 %v3077, %v3013
        %v3086 = vmul.f32 %v3078, %v3014
        %v3087 = vmul.f32 %v3079, %v3015
        %v3088 = vmul.f32 %v3080, %v3016
        %v3089 = vmul.f32 %v3081, %v3017
        %v3090 = vmul.f32 %v3082, %v3018
        %v3091 = vmul.f32 %v3083, %v3019
        %v3092 = vsub.f32 0.0, %v2988
        %v3093 = vsub.f32 0.0, %v2989
        %v3094 = vsub.f32 0.0, %v2990
        %v3095 = vsub.f32 0.0, %v2991
        %v3096 = vsub.f32 0.0, %v2992
        %v3097 = vsub.f32 0.0, %v2993
        %v3098 = vsub.f32 0.0, %v2994
        %v3099 = vsub.f32 0.0, %v2995
        %v3100 = vmul.f32 %v3092, %v2988
        %v3101 = vmul.f32 %v3093, %v2989
        %v3102 = vmul.f32 %v3094, %v2990
        %v3103 = vmul.f32 %v3095, %v2991
        %v3104 = vmul.f32 %v3096, %v2992
        %v3105 = vmul.f32 %v3097, %v2993
        %v3106 = vmul.f32 %v3098, %v2994
        %v3107 = vmul.f32 %v3099, %v2995
        %v3108 = vmul.f32 %v3100, 1.442695
        %v3109 = vpow.pop %v3108
        %v3110 = vmul.f32 %v3101, 1.442695
        %v3111 = vpow.pop %v3110
        %v3112 = vmul.f32 %v3102, 1.442695
        %v3113 = vpow.pop %v3112
        %v3114 = vmul.f32 %v3103, 1.442695
        %v3115 = vpow.pop %v3114
        %v3116 = vmul.f32 %v3104, 1.442695
        %v3117 = vpow.pop %v3116
        %v3118 = vmul.f32 %v3105, 1.442695
        %v3119 = vpow.pop %v3118
        %v3120 = vmul.f32 %v3106, 1.442695
        %v3121 = vpow.pop %v3120
        %v3122 = vmul.f32 %v3107, 1.442695
        %v3123 = vpow.pop %v3122
        %v3124 = vmul.f32 %v3084, %v3109
        %v3125 = vmul.f32 %v3085, %v3111
        %v3126 = vmul.f32 %v3086, %v3113
        %v3127 = vmul.f32 %v3087, %v3115
        %v3128 = vmul.f32 %v3088, %v3117
        %v3129 = vmul.f32 %v3089, %v3119
        %v3130 = vmul.f32 %v3090, %v3121
        %v3131 = vmul.f32 %v3091, %v3123
        %v3132 = vsub.f32 1.0, %v3124
        %v3133 = vsub.f32 1.0, %v3125
        %v3134 = vsub.f32 1.0, %v3126
        %v3135 = vsub.f32 1.0, %v3127
        %v3136 = vsub.f32 1.0, %v3128
        %v3137 = vsub.f32 1.0, %v3129
        %v3138 = vsub.f32 1.0, %v3130
        %v3139 = vsub.f32 1.0, %v3131
        %v3140 = vmul.f32 %v2980, %v3132
        %v3141 = vmul.f32 %v2981, %v3133
        %v3142 = vmul.f32 %v2982, %v3134
        %v3143 = vmul.f32 %v2983, %v3135
        %v3144 = vmul.f32 %v2984, %v3136
        %v3145 = vmul.f32 %v2985, %v3137
        %v3146 = vmul.f32 %v2986, %v3138
        %v3147 = vmul.f32 %v2987, %v3139
        %v3148 = vadd.f32 %v3140, 1.0
        %v3149 = vadd.f32 %v3141, 1.0
        %v3150 = vadd.f32 %v3142, 1.0
        %v3151 = vadd.f32 %v3143, 1.0
        %v3152 = vadd.f32 %v3144, 1.0
        %v3153 = vadd.f32 %v3145, 1.0
        %v3154 = vadd.f32 %v3146, 1.0
        %v3155 = vadd.f32 %v3147, 1.0
        %v3156 = vmul.f32 %v2956, %v3148
        %v3157 = vmul.f32 %v2957, %v3149
        %v3158 = vmul.f32 %v2958, %v3150
        %v3159 = vmul.f32 %v2959, %v3151
        %v3160 = vmul.f32 %v2960, %v3152
        %v3161 = vmul.f32 %v2961, %v3153
        %v3162 = vmul.f32 %v2962, %v3154
        %v3163 = vmul.f32 %v2963, %v3155
        %3164 = vst [vmem:[%s350] sm:$0xff] %v3156
        %3165 = vst [vmem:[%s350 + $0x8] sm:$0xff] %v3157
        %3166 = vst [vmem:[%s350 + $0x10] sm:$0xff] %v3158
        %3167 = vst [vmem:[%s350 + $0x18] sm:$0xff] %v3159
        %3168 = vst [vmem:[%s350 + $0x20] sm:$0xff] %v3160
        %3169 = vst [vmem:[%s350 + $0x28] sm:$0xff] %v3161
        %3170 = vst [vmem:[%s350 + $0x30] sm:$0xff] %v3162
        %3171 = vst [vmem:[%s350 + $0x38] sm:$0xff] %v3163
        %s3172 = sand.u32 %s216, 1
        %s3173 = scalar_lea.sflag [#allocation3], %s3172
        %s3174 = sand.u32 %s216, 1
        %s3175 = smul.addr %s3174, 64
        %s3176 = scalar_lea.vmem [#allocation2], %s3175
        // Predicated region
        $region49: #{tpu_custom_call.1} parent=47 // pred_check
          %p3177 = pneg %p226
        $region50: #{tpu_custom_call.1} parent=47 // pred_check_branch
          %3179 = sbr.rel (%p3177) target = $region52
        $region51: #{tpu_custom_call.1} parent=47 // pred_region
          %s3181 = ssub.s32 1024, 1024
          %3182 = vsyncadd %s3173, %s3181
          %s3183 = smul.addr %s25, 8
          %s3184 = sadd.s32 %s26, %s3183
          %s3185 = smul.addr %s3184, 128
          %s3186 = scalar_lea.hbm %s7, %s3185
          %s3187 = sshll.u32 %s3176, 4
          %s3188 = int_to_ptr.vmem [resolvable:$true] %s3187
          %3193 = dma.vmem_to_hbm [thread:$0]  %s3188, 1024, %s3186, %s3173, 128, 128, 8
        $region52: #{tpu_custom_call.1} parent=47 // pred_fallthru
          _
      $region48: #{tpu_custom_call.1} parent=5 // pred_fallthru
        _
      %p3194 = scmp.le.s32.totalorder 2, %s16
      // Predicated region
      $region53: #{tpu_custom_call.1} parent=5 // pred_check
        %p3195 = pneg %p3194
      $region54: #{tpu_custom_call.1} parent=5 // pred_check_branch
        %3197 = sbr.rel (%p3195) target = $region56
      $region55: #{tpu_custom_call.1} parent=5 // pred_region
        %s3198 = ssub.s32 %s16, 2
        // Predicated region
        $region57: #{tpu_custom_call.1} parent=55 // pred_check
          %p3199 = pneg %p232
        $region58: #{tpu_custom_call.1} parent=55 // pred_check_branch
          %3201 = sbr.rel (%p3199) target = $region60
        $region59: #{tpu_custom_call.1} parent=55 // pred_region
          %s3202 = sand.u32 %s217, 1
          %s3203 = scalar_lea.sflag [#allocation3], %s3202
          %s3204 = sand.u32 %s217, 1
          %s3205 = smul.addr %s3204, 64
          %s3206 = scalar_lea.vmem [#allocation2], %s3205
          %3207 = dma.done %s3203, 1024
        $region60: #{tpu_custom_call.1} parent=55 // pred_fallthru
          _
      $region56: #{tpu_custom_call.1} parent=5 // pred_fallthru
        _
    $region6: #{tpu_custom_call.1} parent=1 // loop_footer
      %s20 = sadd.s32 1, %s16
    $region7: #{tpu_custom_call.1} parent=1 // loop_footer_branch
      %15 = sbr.rel target = $region3
    $region8: #{tpu_custom_call.1} parent=1 // loop_exit
      _
    %3208 = vsyncpa [#allocation3], 1
    %s3209 = scalar_lea.sflag [#allocation3], 1
    %3210 = vsyncpa %s3209, 1

</llo_original>
